<compile_context>
chip_gen: v7x
topology: tpu7x:2x2x1
jax: 0.10.0
libtpu: 0.0.40
codegen_flags: <defaults>
</compile_context>

<pallas_src>
import functools

import jax
import jax.numpy as jnp
from jax import lax
from jax.experimental import pallas as pl
from jax.experimental.pallas import tpu as pltpu


# ----------------------------- Pallas kernel --------------------------------
def _wn_kernel(*refs, hidden, n_layers, kernel_size, dilation_rate, has_g):
    if has_g:
        (x_ref, mask_ref, g_ref, in_w_ref, in_b_ref, rs_w_ref, rs_b_ref,
         cond_w_ref, cond_b_ref, out_ref, xpad_ref) = refs
    else:
        (x_ref, mask_ref, in_w_ref, in_b_ref, rs_w_ref, rs_b_ref,
         out_ref, xpad_ref) = refs
        g_ref = cond_w_ref = cond_b_ref = None

    H = hidden
    K = kernel_size
    T = out_ref.shape[2]                       # lane-padded time extent
    P = (xpad_ref.shape[1] - T) // 2           # halo width (>= max dilation pad)

    mask = mask_ref[0]                         # (1, T), broadcasts over channels

    # zero-init the haloed residual buffer, place x in the middle; the halo
    # stays zero => implicit "same" zero padding for every dilated tap.
    xpad_ref[...] = jnp.zeros_like(xpad_ref)
    xpad_ref[:, P:P + T] = x_ref[0]

    out = jnp.zeros((H, T), jnp.float32)

    if has_g:
        # 1x1 cond conv once for all layers: (2H*n_layers, gin) @ (gin, T)
        cond = (jnp.dot(cond_w_ref[...], g_ref[0],
                        preferred_element_type=jnp.float32)
                + cond_b_ref[...])
    else:
        cond = None

    for i in range(n_layers):                  # static unroll (serial residual)
        d = dilation_rate ** i
        p = d * (K - 1) // 2                   # this layer's "same" padding

        # dilated conv as K shifted (2H, H) @ (H, T) MXU matmuls
        acc = jnp.zeros((2 * H, T), jnp.float32)
        for k in range(K):
            off = P + k * d - p                # static, 0 <= off <= 2P
            acc = acc + jnp.dot(in_w_ref[i, k], xpad_ref[:, off:off + T],
                                preferred_element_type=jnp.float32)
        acc = acc + in_b_ref[i]
        if has_g:
            acc = acc + cond[2 * H * i:2 * H * (i + 1), :]

        # commons.fused_add_tanh_sigmoid_multiply (tanh/sigmoid -> EUP slot)
        acts = jnp.tanh(acc[:H, :]) * jax.nn.sigmoid(acc[H:, :])
        # TODO(synk): dropout (p_dropout > 0) not implemented; inference path.

        # 1x1 res/skip conv (last layer's weights are zero-padded to 2H rows)
        rs = (jnp.dot(rs_w_ref[i], acts, preferred_element_type=jnp.float32)
              + rs_b_ref[i])

        if i < n_layers - 1:
            x_cur = xpad_ref[:, P:P + T]
            xpad_ref[:, P:P + T] = (x_cur + rs[:H, :]) * mask
            out = out + rs[H:, :]
        else:
            out = out + rs[:H, :]

    out_ref[0] = (out * mask).astype(out_ref.dtype)


# ------------------------------- wrapper -------------------------------------
def wn_forward(params, x, x_mask, g=None):
    """Pallas implementation of WN.forward (inference, p_dropout == 0)."""
    H = params["hidden_channels"]
    K = params["kernel_size"]
    dil = params["dilation_rate"]
    n_layers = params["n_layers"]

    B, Hx, T = x.shape
    assert Hx == H
    has_g = g is not None

    # ---- pack per-layer weights into stacked, kernel-friendly arrays ----
    # in_w_stack: (n_layers, K, 2H, H);  in_b_stack: (n_layers, 2H, 1)
    in_w_stack = jnp.stack(
        [jnp.transpose(w.astype(jnp.float32), (2, 0, 1)) for w in params["in_w"]])
    in_b_stack = jnp.stack(
        [b.astype(jnp.float32)[:, None] for b in params["in_b"]])
    # rs_w_stack: (n_layers, 2H, H) with the last layer zero-padded to 2H rows
    rs_w_full, rs_b_full = [], []
    for i in range(n_layers):
        w = params["rs_w"][i].astype(jnp.float32)[:, :, 0]    # (out, H)
        b = params["rs_b"][i].astype(jnp.float32)
        if w.shape[0] < 2 * H:
            w = jnp.concatenate([w, jnp.zeros((2 * H - w.shape[0], H), w.dtype)], 0)
            b = jnp.concatenate([b, jnp.zeros((2 * H - b.shape[0],), b.dtype)], 0)
        rs_w_full.append(w)
        rs_b_full.append(b[:, None])
    rs_w_stack = jnp.stack(rs_w_full)
    rs_b_stack = jnp.stack(rs_b_full)

    # ---- lane-dense time padding (multiple of 128); mask padded with zeros ----
    T_pad = ((T + 127) // 128) * 128
    pad_t = T_pad - T
    x_p = jnp.pad(x.astype(jnp.float32), ((0, 0), (0, 0), (0, pad_t)))
    m_p = jnp.pad(x_mask.astype(jnp.float32), ((0, 0), (0, 0), (0, pad_t)))

    # halo = max receptive radius over all layers, rounded up to 128 so the
    # residual slab [P:P+T] read/write is lane-aligned.
    P_raw = (dil ** (n_layers - 1)) * (K - 1) // 2
    P = 0 if P_raw == 0 else ((P_raw + 127) // 128) * 128

    inputs = [x_p, m_p]
    in_specs = [
        pl.BlockSpec((1, H, T_pad), lambda i: (i, 0, 0)),
        pl.BlockSpec((1, 1, T_pad), lambda i: (i, 0, 0)),
    ]
    if has_g:
        gin = g.shape[1]
        g_p = jnp.pad(g.astype(jnp.float32), ((0, 0), (0, 0), (0, pad_t)))
        inputs.append(g_p)
        in_specs.append(pl.BlockSpec((1, gin, T_pad), lambda i: (i, 0, 0)))

    inputs += [in_w_stack, in_b_stack, rs_w_stack, rs_b_stack]
    in_specs += [
        pl.BlockSpec(in_w_stack.shape, lambda i: (0, 0, 0, 0)),
        pl.BlockSpec(in_b_stack.shape, lambda i: (0, 0, 0)),
        pl.BlockSpec(rs_w_stack.shape, lambda i: (0, 0, 0)),
        pl.BlockSpec(rs_b_stack.shape, lambda i: (0, 0, 0)),
    ]
    if has_g:
        cond_w = params["cond_w"].astype(jnp.float32)[:, :, 0]     # (2H*n, gin)
        cond_b = params["cond_b"].astype(jnp.float32)[:, None]     # (2H*n, 1)
        inputs += [cond_w, cond_b]
        in_specs += [
            pl.BlockSpec(cond_w.shape, lambda i: (0, 0)),
            pl.BlockSpec(cond_b.shape, lambda i: (0, 0)),
        ]

    kernel = functools.partial(
        _wn_kernel, hidden=H, n_layers=n_layers, kernel_size=K,
        dilation_rate=dil, has_g=has_g)

    out = pl.pallas_call(
        kernel,
        out_shape=jax.ShapeDtypeStruct((B, H, T_pad), jnp.float32),
        grid=(B,),
        in_specs=in_specs,
        out_specs=pl.BlockSpec((1, H, T_pad), lambda i: (i, 0, 0)),
        scratch_shapes=[pltpu.VMEM((H, T_pad + 2 * P), jnp.float32)],
        compiler_params=pltpu.CompilerParams(
            dimension_semantics=("parallel",)),
    )(*inputs)

    return out[:, :, :T]


# --------------------------- parameter helpers -------------------------------
def _fold_weight_norm(v, g_scale):
    """PyTorch weight_norm(dim=0): w = g * v / ||v|| (norm over all dims but 0)."""
    norm = jnp.sqrt(jnp.sum(v ** 2, axis=tuple(range(1, v.ndim)), keepdims=True))
    return g_scale.reshape((-1,) + (1,) * (v.ndim - 1)) * v / norm


def init_wn_params(key, hidden_channels, kernel_size, dilation_rate, n_layers,
                   gin_channels=0):
    assert kernel_size % 2 == 1
    H, K = hidden_channels, kernel_size
    keys = list(jax.random.split(key, 6 * n_layers + 3))
    nk = iter(keys).__next__

    in_w, in_b, rs_w, rs_b = [], [], [], []
    for i in range(n_layers):
        v = 0.3 * jax.random.normal(nk(), (2 * H, H, K), jnp.float32)
        gs = jax.random.uniform(nk(), (2 * H,), jnp.float32, 0.5, 1.5)
        in_w.append(_fold_weight_norm(v, gs))
        in_b.append(0.1 * jax.random.normal(nk(), (2 * H,), jnp.float32))

        rs_out = 2 * H if i < n_layers - 1 else H
        v = 0.3 * jax.random.normal(nk(), (rs_out, H, 1), jnp.float32)
        gs = jax.random.uniform(nk(), (rs_out,), jnp.float32, 0.5, 1.5)
        rs_w.append(_fold_weight_norm(v, gs))
        rs_b.append(0.1 * jax.random.normal(nk(), (rs_out,), jnp.float32))

    params = dict(hidden_channels=H, kernel_size=K, dilation_rate=dilation_rate,
                  n_layers=n_layers, gin_channels=gin_channels,
                  in_w=in_w, in_b=in_b, rs_w=rs_w, rs_b=rs_b)
    if gin_channels:
        v = 0.3 * jax.random.normal(nk(), (2 * H * n_layers, gin_channels, 1),
                                    jnp.float32)
        gs = jax.random.uniform(nk(), (2 * H * n_layers,), jnp.float32, 0.5, 1.5)
        params["cond_w"] = _fold_weight_norm(v, gs)
        params["cond_b"] = 0.1 * jax.random.normal(nk(), (2 * H * n_layers,),
                                                   jnp.float32)
    return params


# ---------------------------- pure-JAX reference -----------------------------
def _conv1d(x, w, b, dilation=1, padding=0):
    out = lax.conv_general_dilated(
        x, w, window_strides=(1,), padding=[(padding, padding)],
        rhs_dilation=(dilation,), dimension_numbers=('NCH', 'OIH', 'NCH'))
    return out + b[None, :, None]


def _wn_reference(params, x, x_mask, g=None):
    H = params["hidden_channels"]
    K = params["kernel_size"]
    dil = params["dilation_rate"]
    n_layers = params["n_layers"]

    x = x.astype(jnp.float32)
    mask = x_mask.astype(jnp.float32)
    output = jnp.zeros_like(x)
    if g is not None:
        g_all = _conv1d(g.astype(jnp.float32), params["cond_w"], params["cond_b"])
    for i in range(n_layers):
        d = dil ** i
        p = d * (K - 1) // 2
        x_in = _conv1d(x, params["in_w"][i], params["in_b"][i],
                       dilation=d, padding=p)
        if g is not None:
            g_l = g_all[:, i * 2 * H:(i + 1) * 2 * H, :]
        else:
            g_l = jnp.zeros_like(x_in)
        in_act = x_in + g_l
        acts = jnp.tanh(in_act[:, :H]) * jax.nn.sigmoid(in_act[:, H:])
        rs = _conv1d(acts, params["rs_w"][i], params["rs_b"][i])
        if i < n_layers - 1:
            x = (x + rs[:, :H]) * mask
            output = output + rs[:, H:]
        else:
            output = output + rs
    return output * mask


if __name__ == "__main__":
    B, H, T = 2, 16, 64
    K, dil_rate, n_layers, gin = 3, 2, 3, 8

    key = jax.random.PRNGKey(0)
    k_params, k_x, k_g = jax.random.split(key, 3)

    params = init_wn_params(k_params, H, K, dil_rate, n_layers, gin_channels=gin)

    x = jax.random.normal(k_x, (B, H, T), jnp.float32)
    g = jax.random.normal(k_g, (B, gin, T), jnp.float32)
    lengths = jnp.array([T, T - 10], jnp.int32)
    x_mask = (jnp.arange(T)[None, :] < lengths[:, None]
              ).astype(jnp.float32)[:, None, :]              # (B, 1, T)

    # conditioned path
    out = wn_forward(params, x, x_mask, g=g)
    jax.block_until_ready(out)
    ref = _wn_reference(params, x, x_mask, g=g)
    assert out.shape == (B, H, T)
    assert jnp.allclose(out, ref, rtol=2e-3, atol=1e-3), (
        "conditioned mismatch, max abs err = "
        f"{float(jnp.max(jnp.abs(out - ref)))}")

    # unconditioned path (g = None)
    out_ng = wn_forward(params, x, x_mask, g=None)
    jax.block_until_ready(out_ng)
    ref_ng = _wn_reference(params, x, x_mask, g=None)
    assert jnp.allclose(out_ng, ref_ng, rtol=2e-3, atol=1e-3), (
        "unconditioned mismatch, max abs err = "
        f"{float(jnp.max(jnp.abs(out_ng - ref_ng)))}")

    print("KERNEL_OK")
</pallas_src>

<mosaic_0001>
module attributes {stable_mosaic.version = 11 : i64} {
  func.func @_wn_kernel(%arg0: i32, %arg1: memref<1x16x128xf32, #tpu.memory_space<vmem>>, %arg2: memref<1x1x128xf32, #tpu.memory_space<vmem>>, %arg3: memref<1x8x128xf32, #tpu.memory_space<vmem>>, %arg4: memref<3x3x32x16xf32, #tpu.memory_space<vmem>>, %arg5: memref<3x32x1xf32, #tpu.memory_space<vmem>>, %arg6: memref<3x32x16xf32, #tpu.memory_space<vmem>>, %arg7: memref<3x32x1xf32, #tpu.memory_space<vmem>>, %arg8: memref<96x8xf32, #tpu.memory_space<vmem>>, %arg9: memref<96x1xf32, #tpu.memory_space<vmem>>, %arg10: memref<1x16x128xf32, #tpu.memory_space<vmem>>, %arg11: memref<16x384xf32, #tpu.memory_space<vmem>>) attributes {dimension_semantics = [#tpu.dimension_semantics<parallel>], iteration_bounds = array<i64: 2>, scalar_prefetch = 0 : i64, scratch_operands = 1 : i64, tpu.core_type = #tpu.core_type<tc>, window_params = [{transform_indices = @transform_0, window_bounds = array<i64: 1, 16, 128>}, {transform_indices = @transform_1, window_bounds = array<i64: 1, 1, 128>}, {transform_indices = @transform_2, window_bounds = array<i64: 1, 8, 128>}, {pipeline_mode = #tpu.pipeline_mode<synchronous>, transform_indices = @transform_3, window_bounds = array<i64: 3, 3, 32, 16>}, {pipeline_mode = #tpu.pipeline_mode<synchronous>, transform_indices = @transform_4, window_bounds = array<i64: 3, 32, 1>}, {pipeline_mode = #tpu.pipeline_mode<synchronous>, transform_indices = @transform_5, window_bounds = array<i64: 3, 32, 16>}, {pipeline_mode = #tpu.pipeline_mode<synchronous>, transform_indices = @transform_6, window_bounds = array<i64: 3, 32, 1>}, {pipeline_mode = #tpu.pipeline_mode<synchronous>, transform_indices = @transform_7, window_bounds = array<i64: 96, 8>}, {pipeline_mode = #tpu.pipeline_mode<synchronous>, transform_indices = @transform_8, window_bounds = array<i64: 96, 1>}, {transform_indices = @transform_9, window_bounds = array<i64: 1, 16, 128>}]} {
    %c0 = arith.constant 0 : index
    %c0_0 = arith.constant 0 : index
    %c0_1 = arith.constant 0 : index
    %0 = vector.load %arg2[%c0, %c0_0, %c0_1] : memref<1x1x128xf32, #tpu.memory_space<vmem>>, vector<1x1x128xf32>
    %1 = vector.shape_cast %0 : vector<1x1x128xf32> to vector<1x128xf32>
    %cst = arith.constant 0.000000e+00 : f32
    %2 = vector.broadcast %cst : f32 to vector<16x384xf32>
    %c0_2 = arith.constant 0 : index
    %c0_3 = arith.constant 0 : index
    %3 = vector.load %arg11[%c0_2, %c0_3] : memref<16x384xf32, #tpu.memory_space<vmem>>, vector<16x384xf32>
    tpu.vector_store %arg11[%c0_2, %c0_3], %2 {strides = array<i32>} : memref<16x384xf32, #tpu.memory_space<vmem>>, vector<16x384xf32>,
    %c0_4 = arith.constant 0 : index
    %c0_5 = arith.constant 0 : index
    %c0_6 = arith.constant 0 : index
    %4 = vector.load %arg1[%c0_4, %c0_5, %c0_6] : memref<1x16x128xf32, #tpu.memory_space<vmem>>, vector<1x16x128xf32>
    %5 = vector.shape_cast %4 : vector<1x16x128xf32> to vector<16x128xf32>
    %c0_7 = arith.constant 0 : index
    %c128 = arith.constant 128 : index
    %6 = vector.load %arg11[%c0_7, %c128] : memref<16x384xf32, #tpu.memory_space<vmem>>, vector<16x128xf32>
    tpu.vector_store %arg11[%c0_7, %c128], %5 {strides = array<i32>} : memref<16x384xf32, #tpu.memory_space<vmem>>, vector<16x128xf32>,
    %cst_8 = arith.constant 0.000000e+00 : f32
    %7 = vector.broadcast %cst_8 : f32 to vector<16x128xf32>
    %c0_9 = arith.constant 0 : index
    %c0_10 = arith.constant 0 : index
    %8 = vector.load %arg8[%c0_9, %c0_10] : memref<96x8xf32, #tpu.memory_space<vmem>>, vector<96x8xf32>
    %c0_11 = arith.constant 0 : index
    %c0_12 = arith.constant 0 : index
    %c0_13 = arith.constant 0 : index
    %9 = vector.load %arg3[%c0_11, %c0_12, %c0_13] : memref<1x8x128xf32, #tpu.memory_space<vmem>>, vector<1x8x128xf32>
    %10 = vector.shape_cast %9 : vector<1x8x128xf32> to vector<8x128xf32>
    %cst_14 = arith.constant dense<0.000000e+00> : vector<96x128xf32>
    %11 = tpu.matmul %8, %10, %cst_14 {dimension_numbers = #tpu.dot_dimension_numbers<[1], [0], [0], [1], [0, 0, 1, 1], [], []>} : vector<96x8xf32>, vector<8x128xf32>, vector<96x128xf32> -> vector<96x128xf32>
    %c0_15 = arith.constant 0 : index
    %c0_16 = arith.constant 0 : index
    %12 = vector.load %arg9[%c0_15, %c0_16] : memref<96x1xf32, #tpu.memory_space<vmem>>, vector<96x1xf32>
    %13 = vector.broadcast %12 : vector<96x1xf32> to vector<96x128xf32>
    %14 = arith.addf %11, %13 : vector<96x128xf32>
    %cst_17 = arith.constant 0.000000e+00 : f32
    %15 = vector.broadcast %cst_17 : f32 to vector<32x128xf32>
    %c0_18 = arith.constant 0 : index
    %c0_19 = arith.constant 0 : index
    %c0_20 = arith.constant 0 : index
    %c0_21 = arith.constant 0 : index
    %16 = vector.load %arg4[%c0_18, %c0_19, %c0_20, %c0_21] : memref<3x3x32x16xf32, #tpu.memory_space<vmem>>, vector<1x1x32x16xf32>
    %17 = vector.shape_cast %16 : vector<1x1x32x16xf32> to vector<32x16xf32>
    %c0_22 = arith.constant 0 : index
    %c127 = arith.constant 127 : index
    %18 = vector.load %arg11[%c0_22, %c127] : memref<16x384xf32, #tpu.memory_space<vmem>>, vector<16x128xf32>
    %cst_23 = arith.constant dense<0.000000e+00> : vector<32x128xf32>
    %19 = tpu.matmul %17, %18, %cst_23 {dimension_numbers = #tpu.dot_dimension_numbers<[1], [0], [0], [1], [0, 0, 1, 1], [], []>} : vector<32x16xf32>, vector<16x128xf32>, vector<32x128xf32> -> vector<32x128xf32>
    %20 = arith.addf %15, %19 : vector<32x128xf32>
    %c0_24 = arith.constant 0 : index
    %c1 = arith.constant 1 : index
    %c0_25 = arith.constant 0 : index
    %c0_26 = arith.constant 0 : index
    %21 = vector.load %arg4[%c0_24, %c1, %c0_25, %c0_26] : memref<3x3x32x16xf32, #tpu.memory_space<vmem>>, vector<1x1x32x16xf32>
    %22 = vector.shape_cast %21 : vector<1x1x32x16xf32> to vector<32x16xf32>
    %c0_27 = arith.constant 0 : index
    %c128_28 = arith.constant 128 : index
    %23 = vector.load %arg11[%c0_27, %c128_28] : memref<16x384xf32, #tpu.memory_space<vmem>>, vector<16x128xf32>
    %cst_29 = arith.constant dense<0.000000e+00> : vector<32x128xf32>
    %24 = tpu.matmul %22, %23, %cst_29 {dimension_numbers = #tpu.dot_dimension_numbers<[1], [0], [0], [1], [0, 0, 1, 1], [], []>} : vector<32x16xf32>, vector<16x128xf32>, vector<32x128xf32> -> vector<32x128xf32>
    %25 = arith.addf %20, %24 : vector<32x128xf32>
    %c0_30 = arith.constant 0 : index
    %c2 = arith.constant 2 : index
    %c0_31 = arith.constant 0 : index
    %c0_32 = arith.constant 0 : index
    %26 = vector.load %arg4[%c0_30, %c2, %c0_31, %c0_32] : memref<3x3x32x16xf32, #tpu.memory_space<vmem>>, vector<1x1x32x16xf32>
    %27 = vector.shape_cast %26 : vector<1x1x32x16xf32> to vector<32x16xf32>
    %c0_33 = arith.constant 0 : index
    %c129 = arith.constant 129 : index
    %28 = vector.load %arg11[%c0_33, %c129] : memref<16x384xf32, #tpu.memory_space<vmem>>, vector<16x128xf32>
    %cst_34 = arith.constant dense<0.000000e+00> : vector<32x128xf32>
    %29 = tpu.matmul %27, %28, %cst_34 {dimension_numbers = #tpu.dot_dimension_numbers<[1], [0], [0], [1], [0, 0, 1, 1], [], []>} : vector<32x16xf32>, vector<16x128xf32>, vector<32x128xf32> -> vector<32x128xf32>
    %30 = arith.addf %25, %29 : vector<32x128xf32>
    %c0_35 = arith.constant 0 : index
    %c0_36 = arith.constant 0 : index
    %c0_37 = arith.constant 0 : index
    %31 = vector.load %arg5[%c0_35, %c0_36, %c0_37] : memref<3x32x1xf32, #tpu.memory_space<vmem>>, vector<1x32x1xf32>
    %32 = vector.shape_cast %31 : vector<1x32x1xf32> to vector<32x1xf32>
    %33 = vector.broadcast %32 : vector<32x1xf32> to vector<32x128xf32>
    %34 = arith.addf %30, %33 : vector<32x128xf32>
    %35 = vector.extract_strided_slice %14 {offsets = [0, 0], sizes = [32, 128], strides = [1, 1]} : vector<96x128xf32> to vector<32x128xf32>
    %36 = arith.addf %34, %35 : vector<32x128xf32>
    %37 = vector.extract_strided_slice %36 {offsets = [0, 0], sizes = [16, 128], strides = [1, 1]} : vector<32x128xf32> to vector<16x128xf32>
    %38 = math.tanh %37 : vector<16x128xf32>
    %39 = vector.extract_strided_slice %36 {offsets = [16, 0], sizes = [16, 128], strides = [1, 1]} : vector<32x128xf32> to vector<16x128xf32>
    %40 = arith.negf %39 : vector<16x128xf32>
    %41 = math.exp %40 : vector<16x128xf32>
    %cst_38 = arith.constant 1.000000e+00 : f32
    %42 = vector.broadcast %cst_38 : f32 to vector<16x128xf32>
    %43 = arith.addf %42, %41 : vector<16x128xf32>
    %44 = arith.divf %42, %43 : vector<16x128xf32>
    %45 = arith.mulf %38, %44 : vector<16x128xf32>
    %c0_39 = arith.constant 0 : index
    %c0_40 = arith.constant 0 : index
    %c0_41 = arith.constant 0 : index
    %46 = vector.load %arg6[%c0_39, %c0_40, %c0_41] : memref<3x32x16xf32, #tpu.memory_space<vmem>>, vector<1x32x16xf32>
    %47 = vector.shape_cast %46 : vector<1x32x16xf32> to vector<32x16xf32>
    %cst_42 = arith.constant dense<0.000000e+00> : vector<32x128xf32>
    %48 = tpu.matmul %47, %45, %cst_42 {dimension_numbers = #tpu.dot_dimension_numbers<[1], [0], [0], [1], [0, 0, 1, 1], [], []>} : vector<32x16xf32>, vector<16x128xf32>, vector<32x128xf32> -> vector<32x128xf32>
    %c0_43 = arith.constant 0 : index
    %c0_44 = arith.constant 0 : index
    %c0_45 = arith.constant 0 : index
    %49 = vector.load %arg7[%c0_43, %c0_44, %c0_45] : memref<3x32x1xf32, #tpu.memory_space<vmem>>, vector<1x32x1xf32>
    %50 = vector.shape_cast %49 : vector<1x32x1xf32> to vector<32x1xf32>
    %51 = vector.broadcast %50 : vector<32x1xf32> to vector<32x128xf32>
    %52 = arith.addf %48, %51 : vector<32x128xf32>
    %c0_46 = arith.constant 0 : index
    %c128_47 = arith.constant 128 : index
    %53 = vector.load %arg11[%c0_46, %c128_47] : memref<16x384xf32, #tpu.memory_space<vmem>>, vector<16x128xf32>
    %54 = vector.extract_strided_slice %52 {offsets = [0, 0], sizes = [16, 128], strides = [1, 1]} : vector<32x128xf32> to vector<16x128xf32>
    %55 = arith.addf %53, %54 : vector<16x128xf32>
    %56 = vector.broadcast %1 : vector<1x128xf32> to vector<16x128xf32>
    %57 = arith.mulf %55, %56 : vector<16x128xf32>
    %c0_48 = arith.constant 0 : index
    %c128_49 = arith.constant 128 : index
    %58 = vector.load %arg11[%c0_48, %c128_49] : memref<16x384xf32, #tpu.memory_space<vmem>>, vector<16x128xf32>
    tpu.vector_store %arg11[%c0_48, %c128_49], %57 {strides = array<i32>} : memref<16x384xf32, #tpu.memory_space<vmem>>, vector<16x128xf32>,
    %59 = vector.extract_strided_slice %52 {offsets = [16, 0], sizes = [16, 128], strides = [1, 1]} : vector<32x128xf32> to vector<16x128xf32>
    %60 = arith.addf %7, %59 : vector<16x128xf32>
    %cst_50 = arith.constant 0.000000e+00 : f32
    %61 = vector.broadcast %cst_50 : f32 to vector<32x128xf32>
    %c1_51 = arith.constant 1 : index
    %c0_52 = arith.constant 0 : index
    %c0_53 = arith.constant 0 : index
    %c0_54 = arith.constant 0 : index
    %62 = vector.load %arg4[%c1_51, %c0_52, %c0_53, %c0_54] : memref<3x3x32x16xf32, #tpu.memory_space<vmem>>, vector<1x1x32x16xf32>
    %63 = vector.shape_cast %62 : vector<1x1x32x16xf32> to vector<32x16xf32>
    %c0_55 = arith.constant 0 : index
    %c126 = arith.constant 126 : index
    %64 = vector.load %arg11[%c0_55, %c126] : memref<16x384xf32, #tpu.memory_space<vmem>>, vector<16x128xf32>
    %cst_56 = arith.constant dense<0.000000e+00> : vector<32x128xf32>
    %65 = tpu.matmul %63, %64, %cst_56 {dimension_numbers = #tpu.dot_dimension_numbers<[1], [0], [0], [1], [0, 0, 1, 1], [], []>} : vector<32x16xf32>, vector<16x128xf32>, vector<32x128xf32> -> vector<32x128xf32>
    %66 = arith.addf %61, %65 : vector<32x128xf32>
    %c1_57 = arith.constant 1 : index
    %c1_58 = arith.constant 1 : index
    %c0_59 = arith.constant 0 : index
    %c0_60 = arith.constant 0 : index
    %67 = vector.load %arg4[%c1_57, %c1_58, %c0_59, %c0_60] : memref<3x3x32x16xf32, #tpu.memory_space<vmem>>, vector<1x1x32x16xf32>
    %68 = vector.shape_cast %67 : vector<1x1x32x16xf32> to vector<32x16xf32>
    %c0_61 = arith.constant 0 : index
    %c128_62 = arith.constant 128 : index
    %69 = vector.load %arg11[%c0_61, %c128_62] : memref<16x384xf32, #tpu.memory_space<vmem>>, vector<16x128xf32>
    %cst_63 = arith.constant dense<0.000000e+00> : vector<32x128xf32>
    %70 = tpu.matmul %68, %69, %cst_63 {dimension_numbers = #tpu.dot_dimension_numbers<[1], [0], [0], [1], [0, 0, 1, 1], [], []>} : vector<32x16xf32>, vector<16x128xf32>, vector<32x128xf32> -> vector<32x128xf32>
    %71 = arith.addf %66, %70 : vector<32x128xf32>
    %c1_64 = arith.constant 1 : index
    %c2_65 = arith.constant 2 : index
    %c0_66 = arith.constant 0 : index
    %c0_67 = arith.constant 0 : index
    %72 = vector.load %arg4[%c1_64, %c2_65, %c0_66, %c0_67] : memref<3x3x32x16xf32, #tpu.memory_space<vmem>>, vector<1x1x32x16xf32>
    %73 = vector.shape_cast %72 : vector<1x1x32x16xf32> to vector<32x16xf32>
    %c0_68 = arith.constant 0 : index
    %c130 = arith.constant 130 : index
    %74 = vector.load %arg11[%c0_68, %c130] : memref<16x384xf32, #tpu.memory_space<vmem>>, vector<16x128xf32>
    %cst_69 = arith.constant dense<0.000000e+00> : vector<32x128xf32>
    %75 = tpu.matmul %73, %74, %cst_69 {dimension_numbers = #tpu.dot_dimension_numbers<[1], [0], [0], [1], [0, 0, 1, 1], [], []>} : vector<32x16xf32>, vector<16x128xf32>, vector<32x128xf32> -> vector<32x128xf32>
    %76 = arith.addf %71, %75 : vector<32x128xf32>
    %c1_70 = arith.constant 1 : index
    %c0_71 = arith.constant 0 : index
    %c0_72 = arith.constant 0 : index
    %77 = vector.load %arg5[%c1_70, %c0_71, %c0_72] : memref<3x32x1xf32, #tpu.memory_space<vmem>>, vector<1x32x1xf32>
    %78 = vector.shape_cast %77 : vector<1x32x1xf32> to vector<32x1xf32>
    %79 = vector.broadcast %78 : vector<32x1xf32> to vector<32x128xf32>
    %80 = arith.addf %76, %79 : vector<32x128xf32>
    %81 = vector.extract_strided_slice %14 {offsets = [32, 0], sizes = [32, 128], strides = [1, 1]} : vector<96x128xf32> to vector<32x128xf32>
    %82 = arith.addf %80, %81 : vector<32x128xf32>
    %83 = vector.extract_strided_slice %82 {offsets = [0, 0], sizes = [16, 128], strides = [1, 1]} : vector<32x128xf32> to vector<16x128xf32>
    %84 = math.tanh %83 : vector<16x128xf32>
    %85 = vector.extract_strided_slice %82 {offsets = [16, 0], sizes = [16, 128], strides = [1, 1]} : vector<32x128xf32> to vector<16x128xf32>
    %86 = arith.negf %85 : vector<16x128xf32>
    %87 = math.exp %86 : vector<16x128xf32>
    %cst_73 = arith.constant 1.000000e+00 : f32
    %88 = vector.broadcast %cst_73 : f32 to vector<16x128xf32>
    %89 = arith.addf %88, %87 : vector<16x128xf32>
    %90 = arith.divf %88, %89 : vector<16x128xf32>
    %91 = arith.mulf %84, %90 : vector<16x128xf32>
    %c1_74 = arith.constant 1 : index
    %c0_75 = arith.constant 0 : index
    %c0_76 = arith.constant 0 : index
    %92 = vector.load %arg6[%c1_74, %c0_75, %c0_76] : memref<3x32x16xf32, #tpu.memory_space<vmem>>, vector<1x32x16xf32>
    %93 = vector.shape_cast %92 : vector<1x32x16xf32> to vector<32x16xf32>
    %cst_77 = arith.constant dense<0.000000e+00> : vector<32x128xf32>
    %94 = tpu.matmul %93, %91, %cst_77 {dimension_numbers = #tpu.dot_dimension_numbers<[1], [0], [0], [1], [0, 0, 1, 1], [], []>} : vector<32x16xf32>, vector<16x128xf32>, vector<32x128xf32> -> vector<32x128xf32>
    %c1_78 = arith.constant 1 : index
    %c0_79 = arith.constant 0 : index
    %c0_80 = arith.constant 0 : index
    %95 = vector.load %arg7[%c1_78, %c0_79, %c0_80] : memref<3x32x1xf32, #tpu.memory_space<vmem>>, vector<1x32x1xf32>
    %96 = vector.shape_cast %95 : vector<1x32x1xf32> to vector<32x1xf32>
    %97 = vector.broadcast %96 : vector<32x1xf32> to vector<32x128xf32>
    %98 = arith.addf %94, %97 : vector<32x128xf32>
    %c0_81 = arith.constant 0 : index
    %c128_82 = arith.constant 128 : index
    %99 = vector.load %arg11[%c0_81, %c128_82] : memref<16x384xf32, #tpu.memory_space<vmem>>, vector<16x128xf32>
    %100 = vector.extract_strided_slice %98 {offsets = [0, 0], sizes = [16, 128], strides = [1, 1]} : vector<32x128xf32> to vector<16x128xf32>
    %101 = arith.addf %99, %100 : vector<16x128xf32>
    %102 = vector.broadcast %1 : vector<1x128xf32> to vector<16x128xf32>
    %103 = arith.mulf %101, %102 : vector<16x128xf32>
    %c0_83 = arith.constant 0 : index
    %c128_84 = arith.constant 128 : index
    %104 = vector.load %arg11[%c0_83, %c128_84] : memref<16x384xf32, #tpu.memory_space<vmem>>, vector<16x128xf32>
    tpu.vector_store %arg11[%c0_83, %c128_84], %103 {strides = array<i32>} : memref<16x384xf32, #tpu.memory_space<vmem>>, vector<16x128xf32>,
    %105 = vector.extract_strided_slice %98 {offsets = [16, 0], sizes = [16, 128], strides = [1, 1]} : vector<32x128xf32> to vector<16x128xf32>
    %106 = arith.addf %60, %105 : vector<16x128xf32>
    %cst_85 = arith.constant 0.000000e+00 : f32
    %107 = vector.broadcast %cst_85 : f32 to vector<32x128xf32>
    %c2_86 = arith.constant 2 : index
    %c0_87 = arith.constant 0 : index
    %c0_88 = arith.constant 0 : index
    %c0_89 = arith.constant 0 : index
    %108 = vector.load %arg4[%c2_86, %c0_87, %c0_88, %c0_89] : memref<3x3x32x16xf32, #tpu.memory_space<vmem>>, vector<1x1x32x16xf32>
    %109 = vector.shape_cast %108 : vector<1x1x32x16xf32> to vector<32x16xf32>
    %c0_90 = arith.constant 0 : index
    %c124 = arith.constant 124 : index
    %110 = vector.load %arg11[%c0_90, %c124] : memref<16x384xf32, #tpu.memory_space<vmem>>, vector<16x128xf32>
    %cst_91 = arith.constant dense<0.000000e+00> : vector<32x128xf32>
    %111 = tpu.matmul %109, %110, %cst_91 {dimension_numbers = #tpu.dot_dimension_numbers<[1], [0], [0], [1], [0, 0, 1, 1], [], []>} : vector<32x16xf32>, vector<16x128xf32>, vector<32x128xf32> -> vector<32x128xf32>
    %112 = arith.addf %107, %111 : vector<32x128xf32>
    %c2_92 = arith.constant 2 : index
    %c1_93 = arith.constant 1 : index
    %c0_94 = arith.constant 0 : index
    %c0_95 = arith.constant 0 : index
    %113 = vector.load %arg4[%c2_92, %c1_93, %c0_94, %c0_95] : memref<3x3x32x16xf32, #tpu.memory_space<vmem>>, vector<1x1x32x16xf32>
    %114 = vector.shape_cast %113 : vector<1x1x32x16xf32> to vector<32x16xf32>
    %c0_96 = arith.constant 0 : index
    %c128_97 = arith.constant 128 : index
    %115 = vector.load %arg11[%c0_96, %c128_97] : memref<16x384xf32, #tpu.memory_space<vmem>>, vector<16x128xf32>
    %cst_98 = arith.constant dense<0.000000e+00> : vector<32x128xf32>
    %116 = tpu.matmul %114, %115, %cst_98 {dimension_numbers = #tpu.dot_dimension_numbers<[1], [0], [0], [1], [0, 0, 1, 1], [], []>} : vector<32x16xf32>, vector<16x128xf32>, vector<32x128xf32> -> vector<32x128xf32>
    %117 = arith.addf %112, %116 : vector<32x128xf32>
    %c2_99 = arith.constant 2 : index
    %c2_100 = arith.constant 2 : index
    %c0_101 = arith.constant 0 : index
    %c0_102 = arith.constant 0 : index
    %118 = vector.load %arg4[%c2_99, %c2_100, %c0_101, %c0_102] : memref<3x3x32x16xf32, #tpu.memory_space<vmem>>, vector<1x1x32x16xf32>
    %119 = vector.shape_cast %118 : vector<1x1x32x16xf32> to vector<32x16xf32>
    %c0_103 = arith.constant 0 : index
    %c132 = arith.constant 132 : index
    %120 = vector.load %arg11[%c0_103, %c132] : memref<16x384xf32, #tpu.memory_space<vmem>>, vector<16x128xf32>
    %cst_104 = arith.constant dense<0.000000e+00> : vector<32x128xf32>
    %121 = tpu.matmul %119, %120, %cst_104 {dimension_numbers = #tpu.dot_dimension_numbers<[1], [0], [0], [1], [0, 0, 1, 1], [], []>} : vector<32x16xf32>, vector<16x128xf32>, vector<32x128xf32> -> vector<32x128xf32>
    %122 = arith.addf %117, %121 : vector<32x128xf32>
    %c2_105 = arith.constant 2 : index
    %c0_106 = arith.constant 0 : index
    %c0_107 = arith.constant 0 : index
    %123 = vector.load %arg5[%c2_105, %c0_106, %c0_107] : memref<3x32x1xf32, #tpu.memory_space<vmem>>, vector<1x32x1xf32>
    %124 = vector.shape_cast %123 : vector<1x32x1xf32> to vector<32x1xf32>
    %125 = vector.broadcast %124 : vector<32x1xf32> to vector<32x128xf32>
    %126 = arith.addf %122, %125 : vector<32x128xf32>
    %127 = vector.extract_strided_slice %14 {offsets = [64, 0], sizes = [32, 128], strides = [1, 1]} : vector<96x128xf32> to vector<32x128xf32>
    %128 = arith.addf %126, %127 : vector<32x128xf32>
    %129 = vector.extract_strided_slice %128 {offsets = [0, 0], sizes = [16, 128], strides = [1, 1]} : vector<32x128xf32> to vector<16x128xf32>
    %130 = math.tanh %129 : vector<16x128xf32>
    %131 = vector.extract_strided_slice %128 {offsets = [16, 0], sizes = [16, 128], strides = [1, 1]} : vector<32x128xf32> to vector<16x128xf32>
    %132 = arith.negf %131 : vector<16x128xf32>
    %133 = math.exp %132 : vector<16x128xf32>
    %cst_108 = arith.constant 1.000000e+00 : f32
    %134 = vector.broadcast %cst_108 : f32 to vector<16x128xf32>
    %135 = arith.addf %134, %133 : vector<16x128xf32>
    %136 = arith.divf %134, %135 : vector<16x128xf32>
    %137 = arith.mulf %130, %136 : vector<16x128xf32>
    %c2_109 = arith.constant 2 : index
    %c0_110 = arith.constant 0 : index
    %c0_111 = arith.constant 0 : index
    %138 = vector.load %arg6[%c2_109, %c0_110, %c0_111] : memref<3x32x16xf32, #tpu.memory_space<vmem>>, vector<1x32x16xf32>
    %139 = vector.shape_cast %138 : vector<1x32x16xf32> to vector<32x16xf32>
    %cst_112 = arith.constant dense<0.000000e+00> : vector<32x128xf32>
    %140 = tpu.matmul %139, %137, %cst_112 {dimension_numbers = #tpu.dot_dimension_numbers<[1], [0], [0], [1], [0, 0, 1, 1], [], []>} : vector<32x16xf32>, vector<16x128xf32>, vector<32x128xf32> -> vector<32x128xf32>
    %c2_113 = arith.constant 2 : index
    %c0_114 = arith.constant 0 : index
    %c0_115 = arith.constant 0 : index
    %141 = vector.load %arg7[%c2_113, %c0_114, %c0_115] : memref<3x32x1xf32, #tpu.memory_space<vmem>>, vector<1x32x1xf32>
    %142 = vector.shape_cast %141 : vector<1x32x1xf32> to vector<32x1xf32>
    %143 = vector.broadcast %142 : vector<32x1xf32> to vector<32x128xf32>
    %144 = arith.addf %140, %143 : vector<32x128xf32>
    %145 = vector.extract_strided_slice %144 {offsets = [0, 0], sizes = [16, 128], strides = [1, 1]} : vector<32x128xf32> to vector<16x128xf32>
    %146 = arith.addf %106, %145 : vector<16x128xf32>
    %147 = vector.broadcast %1 : vector<1x128xf32> to vector<16x128xf32>
    %148 = arith.mulf %146, %147 : vector<16x128xf32>
    %c0_116 = arith.constant 0 : index
    %c0_117 = arith.constant 0 : index
    %c0_118 = arith.constant 0 : index
    %149 = vector.load %arg10[%c0_116, %c0_117, %c0_118] : memref<1x16x128xf32, #tpu.memory_space<vmem>>, vector<1x16x128xf32>
    %150 = vector.shape_cast %149 : vector<1x16x128xf32> to vector<16x128xf32>
    %151 = vector.shape_cast %148 : vector<16x128xf32> to vector<1x16x128xf32>
    tpu.vector_store %arg10[%c0_116, %c0_117, %c0_118], %151 {strides = array<i32>} : memref<1x16x128xf32, #tpu.memory_space<vmem>>, vector<1x16x128xf32>,
    return
  }
  func.func @transform_0(%arg0: i32) -> (i32, i32, i32) {
    %c0_i32 = arith.constant 0 : i32
    %c0_i32_0 = arith.constant 0 : i32
    %c0_i32_1 = arith.constant 0 : i32
    return %arg0, %c0_i32, %c0_i32_0 : i32, i32, i32
  }
  func.func @transform_1(%arg0: i32) -> (i32, i32, i32) {
    %c0_i32 = arith.constant 0 : i32
    %c0_i32_0 = arith.constant 0 : i32
    %c0_i32_1 = arith.constant 0 : i32
    return %arg0, %c0_i32, %c0_i32_0 : i32, i32, i32
  }
  func.func @transform_2(%arg0: i32) -> (i32, i32, i32) {
    %c0_i32 = arith.constant 0 : i32
    %c0_i32_0 = arith.constant 0 : i32
    %c0_i32_1 = arith.constant 0 : i32
    return %arg0, %c0_i32, %c0_i32_0 : i32, i32, i32
  }
  func.func @transform_3(%arg0: i32) -> (i32, i32, i32, i32) {
    %c0_i32 = arith.constant 0 : i32
    %c0_i32_0 = arith.constant 0 : i32
    %c0_i32_1 = arith.constant 0 : i32
    %c0_i32_2 = arith.constant 0 : i32
    %c0_i32_3 = arith.constant 0 : i32
    return %c0_i32, %c0_i32_0, %c0_i32_1, %c0_i32_2 : i32, i32, i32, i32
  }
  func.func @transform_4(%arg0: i32) -> (i32, i32, i32) {
    %c0_i32 = arith.constant 0 : i32
    %c0_i32_0 = arith.constant 0 : i32
    %c0_i32_1 = arith.constant 0 : i32
    %c0_i32_2 = arith.constant 0 : i32
    return %c0_i32, %c0_i32_0, %c0_i32_1 : i32, i32, i32
  }
  func.func @transform_5(%arg0: i32) -> (i32, i32, i32) {
    %c0_i32 = arith.constant 0 : i32
    %c0_i32_0 = arith.constant 0 : i32
    %c0_i32_1 = arith.constant 0 : i32
    %c0_i32_2 = arith.constant 0 : i32
    return %c0_i32, %c0_i32_0, %c0_i32_1 : i32, i32, i32
  }
  func.func @transform_6(%arg0: i32) -> (i32, i32, i32) {
    %c0_i32 = arith.constant 0 : i32
    %c0_i32_0 = arith.constant 0 : i32
    %c0_i32_1 = arith.constant 0 : i32
    %c0_i32_2 = arith.constant 0 : i32
    return %c0_i32, %c0_i32_0, %c0_i32_1 : i32, i32, i32
  }
  func.func @transform_7(%arg0: i32) -> (i32, i32) {
    %c0_i32 = arith.constant 0 : i32
    %c0_i32_0 = arith.constant 0 : i32
    %c0_i32_1 = arith.constant 0 : i32
    return %c0_i32, %c0_i32_0 : i32, i32
  }
  func.func @transform_8(%arg0: i32) -> (i32, i32) {
    %c0_i32 = arith.constant 0 : i32
    %c0_i32_0 = arith.constant 0 : i32
    %c0_i32_1 = arith.constant 0 : i32
    return %c0_i32, %c0_i32_0 : i32, i32
  }
  func.func @transform_9(%arg0: i32) -> (i32, i32, i32) {
    %c0_i32 = arith.constant 0 : i32
    %c0_i32_0 = arith.constant 0 : i32
    %c0_i32_1 = arith.constant 0 : i32
    return %arg0, %c0_i32, %c0_i32_0 : i32, i32, i32
  }
}

</mosaic_0001>

<llo_original>
// kernel: tpu_custom_call.1
$region0: #{tpu_custom_call.1}
  #allocation0 [shape = 'u32[]', space=smem, size = 0x4, offset = 0x4, fixed_abs, tag = 'smem constant byte address 0x4 - core index']
  #allocation1 [shape = 'u32[144,128]{1,0:T(1,128)}', space=vmem, size = 0x12000, scoped, tag = 'internal scratch']
  #allocation2 [shape = 'f32[16,384]{1,0:T(8,128)}', space=vmem, size = 0x6000, scoped, tag = 'scratch operand']
  %s0 = inlined_call_operand.vmem [shape: f32[2,16,128], index: 0, kind: input, shape index: {}]
  %s1 = inlined_call_operand.vmem [shape: f32[2,1,128], index: 1, kind: input, shape index: {}]
  %s2 = inlined_call_operand.vmem [shape: f32[2,8,128], index: 2, kind: input, shape index: {}]
  %s3 = inlined_call_operand.vmem [shape: f32[3,3,32,16], index: 3, kind: input, shape index: {}]
  %s4 = inlined_call_operand.vmem [shape: f32[3,32,1], index: 4, kind: input, shape index: {}]
  %s5 = inlined_call_operand.vmem [shape: f32[3,32,16], index: 5, kind: input, shape index: {}]
  %s6 = inlined_call_operand.vmem [shape: f32[3,32,1], index: 6, kind: input, shape index: {}]
  %s7 = inlined_call_operand.vmem [shape: f32[96,8], index: 7, kind: input, shape index: {}]
  %s8 = inlined_call_operand.vmem [shape: f32[96,1], index: 8, kind: input, shape index: {}]
  %s9 = inlined_call_operand.hbm [shape: f32[2,16,128], index: 9, kind: output, shape index: {}]
  %s10 = sld [smem:[#allocation0]]
  $region69: #{tpu_custom_call.1} parent=0
    _
  %s12 = ssub.s32 1, %s10
  %s13 = scalar_select 0, %s12, %s10
  $region1: #{tpu_custom_call.1} parent=0
    #allocation3 [shape = 'u8[16384]{0}', space=vmem, size = 0x4000, scoped, tag = 'output window, operand 0']
    #allocation4 [shape = 's32[2]{0}', space=sflag, size = 0x8, scoped, tag = 'scoped memory for tpu_custom_call.1']
    %14 = vsyncpa [#allocation4], 0
    %s15 = scalar_lea.sflag [#allocation4], 1
    %16 = vsyncpa %s15, 0
    loop: start=0, step=1, limit=4
    $region2: #{tpu_custom_call.1} parent=1 // loop_pre_header
      _
    $region3: #{tpu_custom_call.1} parent=1 // loop_header
      %s18 = sphi 0, %s22
      %p19 = scmp.ge.s32.totalorder %s18, 4
      %s28 = sphi 0, %s30
      %s31 = sphi 0, %s28
      %s32 = sphi 0, %s31
      %s48 = sphi 0, %s32
      %s54 = sphi 0, %s56
      %s57 = sphi 0, %s54
      %s58 = sphi 0, %s57
      %s74 = sphi 0, %s58
      %s80 = sphi 0, %s82
      %s83 = sphi 0, %s80
      %s84 = sphi 0, %s83
      %s100 = sphi 0, %s84
      %s104 = sphi 0, %s104
      %s106 = sphi 0, %s104
      %s107 = sphi 0, %s106
      %s121 = sphi 0, %s107
      %s125 = sphi 0, %s125
      %s127 = sphi 0, %s125
      %s128 = sphi 0, %s127
      %s142 = sphi 0, %s128
      %s146 = sphi 0, %s146
      %s148 = sphi 0, %s146
      %s149 = sphi 0, %s148
      %s163 = sphi 0, %s149
      %s167 = sphi 0, %s167
      %s169 = sphi 0, %s167
      %s170 = sphi 0, %s169
      %s184 = sphi 0, %s170
      %s188 = sphi 0, %s188
      %s190 = sphi 0, %s188
      %s191 = sphi 0, %s190
      %s205 = sphi 0, %s191
      %s209 = sphi 0, %s209
      %s211 = sphi 0, %s209
      %s212 = sphi 0, %s211
      %s226 = sphi 0, %s212
      %s232 = sphi 0, %s234
      %s235 = sphi 0, %s232
      %s236 = sphi 0, %s235
      %s252 = sphi 0, %s236
    $region4: #{tpu_custom_call.1} parent=1 // loop_header_branch
      %21 = sbr.rel (%p19) target = $region8
    $region5: #{tpu_custom_call.1} parent=1 // loop_body
      %s23 = ssub.s32 %s18, 1
      %s24 = ssub.s32 %s18, 2
      %s25 = sadd.s32 %s18, 1
      %s26 = ssub.s32 %s18, %s25
      %p27 = scmp.eq.s32.totalorder %s26, 0
      %s29 = sadd.s32 %s28, 1
      %s30 = scalar_select %p27, %s28, %s29
      %p33 = pneg %p27
      %p34 = scmp.eq.s32.totalorder %s18, 1
      %p35 = por %p33, %p34
      %p36 = scmp.ne.s32.totalorder %s28, %s31
      %p37 = scmp.eq.s32.totalorder %s18, 0
      %p38 = por %p36, %p37
      %p39 = scmp.ne.s32.totalorder %s28, %s31
      %p40 = scmp.eq.s32.totalorder %s23, 1
      %p41 = por %p39, %p40
      %p42 = scmp.ne.s32.totalorder %s31, %s32
      %p43 = scmp.eq.s32.totalorder %s23, 0
      %p44 = por %p42, %p43
      %p45 = scmp.ne.s32.totalorder %s31, %s32
      %p46 = scmp.eq.s32.totalorder %s24, 1
      %p47 = por %p45, %p46
      %p49 = scmp.ne.s32.totalorder %s32, %s48
      %p50 = scmp.eq.s32.totalorder %s24, 0
      %p51 = por %p49, %p50
      %s52 = ssub.s32 %s18, %s25
      %p53 = scmp.eq.s32.totalorder %s52, 0
      %s55 = sadd.s32 %s54, 1
      %s56 = scalar_select %p53, %s54, %s55
      %p59 = pneg %p53
      %p60 = scmp.eq.s32.totalorder %s18, 1
      %p61 = por %p59, %p60
      %p62 = scmp.ne.s32.totalorder %s54, %s57
      %p63 = scmp.eq.s32.totalorder %s18, 0
      %p64 = por %p62, %p63
      %p65 = scmp.ne.s32.totalorder %s54, %s57
      %p66 = scmp.eq.s32.totalorder %s23, 1
      %p67 = por %p65, %p66
      %p68 = scmp.ne.s32.totalorder %s57, %s58
      %p69 = scmp.eq.s32.totalorder %s23, 0
      %p70 = por %p68, %p69
      %p71 = scmp.ne.s32.totalorder %s57, %s58
      %p72 = scmp.eq.s32.totalorder %s24, 1
      %p73 = por %p71, %p72
      %p75 = scmp.ne.s32.totalorder %s58, %s74
      %p76 = scmp.eq.s32.totalorder %s24, 0
      %p77 = por %p75, %p76
      %s78 = ssub.s32 %s18, %s25
      %p79 = scmp.eq.s32.totalorder %s78, 0
      %s81 = sadd.s32 %s80, 1
      %s82 = scalar_select %p79, %s80, %s81
      %p85 = pneg %p79
      %p86 = scmp.eq.s32.totalorder %s18, 1
      %p87 = por %p85, %p86
      %p88 = scmp.ne.s32.totalorder %s80, %s83
      %p89 = scmp.eq.s32.totalorder %s18, 0
      %p90 = por %p88, %p89
      %p91 = scmp.ne.s32.totalorder %s80, %s83
      %p92 = scmp.eq.s32.totalorder %s23, 1
      %p93 = por %p91, %p92
      %p94 = scmp.ne.s32.totalorder %s83, %s84
      %p95 = scmp.eq.s32.totalorder %s23, 0
      %p96 = por %p94, %p95
      %p97 = scmp.ne.s32.totalorder %s83, %s84
      %p98 = scmp.eq.s32.totalorder %s24, 1
      %p99 = por %p97, %p98
      %p101 = scmp.ne.s32.totalorder %s84, %s100
      %p102 = scmp.eq.s32.totalorder %s24, 0
      %p103 = por %p101, %p102
      %s105 = sadd.s32 %s104, 1
      %p108 = scmp.eq.s32.totalorder %s18, 1
      %p109 = scmp.ne.s32.totalorder %s104, %s106
      %p110 = scmp.eq.s32.totalorder %s18, 0
      %p111 = por %p109, %p110
      %p112 = scmp.ne.s32.totalorder %s104, %s106
      %p113 = scmp.eq.s32.totalorder %s23, 1
      %p114 = por %p112, %p113
      %p115 = scmp.ne.s32.totalorder %s106, %s107
      %p116 = scmp.eq.s32.totalorder %s23, 0
      %p117 = por %p115, %p116
      %p118 = scmp.ne.s32.totalorder %s106, %s107
      %p119 = scmp.eq.s32.totalorder %s24, 1
      %p120 = por %p118, %p119
      %p122 = scmp.ne.s32.totalorder %s107, %s121
      %p123 = scmp.eq.s32.totalorder %s24, 0
      %p124 = por %p122, %p123
      %s126 = sadd.s32 %s125, 1
      %p129 = scmp.eq.s32.totalorder %s18, 1
      %p130 = scmp.ne.s32.totalorder %s125, %s127
      %p131 = scmp.eq.s32.totalorder %s18, 0
      %p132 = por %p130, %p131
      %p133 = scmp.ne.s32.totalorder %s125, %s127
      %p134 = scmp.eq.s32.totalorder %s23, 1
      %p135 = por %p133, %p134
      %p136 = scmp.ne.s32.totalorder %s127, %s128
      %p137 = scmp.eq.s32.totalorder %s23, 0
      %p138 = por %p136, %p137
      %p139 = scmp.ne.s32.totalorder %s127, %s128
      %p140 = scmp.eq.s32.totalorder %s24, 1
      %p141 = por %p139, %p140
      %p143 = scmp.ne.s32.totalorder %s128, %s142
      %p144 = scmp.eq.s32.totalorder %s24, 0
      %p145 = por %p143, %p144
      %s147 = sadd.s32 %s146, 1
      %p150 = scmp.eq.s32.totalorder %s18, 1
      %p151 = scmp.ne.s32.totalorder %s146, %s148
      %p152 = scmp.eq.s32.totalorder %s18, 0
      %p153 = por %p151, %p152
      %p154 = scmp.ne.s32.totalorder %s146, %s148
      %p155 = scmp.eq.s32.totalorder %s23, 1
      %p156 = por %p154, %p155
      %p157 = scmp.ne.s32.totalorder %s148, %s149
      %p158 = scmp.eq.s32.totalorder %s23, 0
      %p159 = por %p157, %p158
      %p160 = scmp.ne.s32.totalorder %s148, %s149
      %p161 = scmp.eq.s32.totalorder %s24, 1
      %p162 = por %p160, %p161
      %p164 = scmp.ne.s32.totalorder %s149, %s163
      %p165 = scmp.eq.s32.totalorder %s24, 0
      %p166 = por %p164, %p165
      %s168 = sadd.s32 %s167, 1
      %p171 = scmp.eq.s32.totalorder %s18, 1
      %p172 = scmp.ne.s32.totalorder %s167, %s169
      %p173 = scmp.eq.s32.totalorder %s18, 0
      %p174 = por %p172, %p173
      %p175 = scmp.ne.s32.totalorder %s167, %s169
      %p176 = scmp.eq.s32.totalorder %s23, 1
      %p177 = por %p175, %p176
      %p178 = scmp.ne.s32.totalorder %s169, %s170
      %p179 = scmp.eq.s32.totalorder %s23, 0
      %p180 = por %p178, %p179
      %p181 = scmp.ne.s32.totalorder %s169, %s170
      %p182 = scmp.eq.s32.totalorder %s24, 1
      %p183 = por %p181, %p182
      %p185 = scmp.ne.s32.totalorder %s170, %s184
      %p186 = scmp.eq.s32.totalorder %s24, 0
      %p187 = por %p185, %p186
      %s189 = sadd.s32 %s188, 1
      %p192 = scmp.eq.s32.totalorder %s18, 1
      %p193 = scmp.ne.s32.totalorder %s188, %s190
      %p194 = scmp.eq.s32.totalorder %s18, 0
      %p195 = por %p193, %p194
      %p196 = scmp.ne.s32.totalorder %s188, %s190
      %p197 = scmp.eq.s32.totalorder %s23, 1
      %p198 = por %p196, %p197
      %p199 = scmp.ne.s32.totalorder %s190, %s191
      %p200 = scmp.eq.s32.totalorder %s23, 0
      %p201 = por %p199, %p200
      %p202 = scmp.ne.s32.totalorder %s190, %s191
      %p203 = scmp.eq.s32.totalorder %s24, 1
      %p204 = por %p202, %p203
      %p206 = scmp.ne.s32.totalorder %s191, %s205
      %p207 = scmp.eq.s32.totalorder %s24, 0
      %p208 = por %p206, %p207
      %s210 = sadd.s32 %s209, 1
      %p213 = scmp.eq.s32.totalorder %s18, 1
      %p214 = scmp.ne.s32.totalorder %s209, %s211
      %p215 = scmp.eq.s32.totalorder %s18, 0
      %p216 = por %p214, %p215
      %p217 = scmp.ne.s32.totalorder %s209, %s211
      %p218 = scmp.eq.s32.totalorder %s23, 1
      %p219 = por %p217, %p218
      %p220 = scmp.ne.s32.totalorder %s211, %s212
      %p221 = scmp.eq.s32.totalorder %s23, 0
      %p222 = por %p220, %p221
      %p223 = scmp.ne.s32.totalorder %s211, %s212
      %p224 = scmp.eq.s32.totalorder %s24, 1
      %p225 = por %p223, %p224
      %p227 = scmp.ne.s32.totalorder %s212, %s226
      %p228 = scmp.eq.s32.totalorder %s24, 0
      %p229 = por %p227, %p228
      %s230 = ssub.s32 %s18, %s25
      %p231 = scmp.eq.s32.totalorder %s230, 0
      %s233 = sadd.s32 %s232, 1
      %s234 = scalar_select %p231, %s232, %s233
      %p237 = pneg %p231
      %p238 = scmp.eq.s32.totalorder %s18, 1
      %p239 = por %p237, %p238
      %p240 = scmp.ne.s32.totalorder %s232, %s235
      %p241 = scmp.eq.s32.totalorder %s18, 0
      %p242 = por %p240, %p241
      %p243 = scmp.ne.s32.totalorder %s232, %s235
      %p244 = scmp.eq.s32.totalorder %s23, 1
      %p245 = por %p243, %p244
      %p246 = scmp.ne.s32.totalorder %s235, %s236
      %p247 = scmp.eq.s32.totalorder %s23, 0
      %p248 = por %p246, %p247
      %p249 = scmp.ne.s32.totalorder %s235, %s236
      %p250 = scmp.eq.s32.totalorder %s24, 1
      %p251 = por %p249, %p250
      %p253 = scmp.ne.s32.totalorder %s236, %s252
      %p254 = scmp.eq.s32.totalorder %s24, 0
      %p255 = por %p253, %p254
      %p256 = scmp.le.s32.totalorder 1, %s18
      %p257 = scmp.lt.s32.totalorder %s18, 3
      %p258 = pnand %p256, %p257
      %p259 = pneg %p258
      // Predicated region
      $region9: #{tpu_custom_call.1} parent=5 // pred_check
        _
      $region10: #{tpu_custom_call.1} parent=5 // pred_check_branch
        %261 = sbr.rel (%p258) target = $region12
      $region11: #{tpu_custom_call.1} parent=5 // pred_region
        %s262 = ssub.s32 %s18, 1
        // Predicated region
        $region13: #{tpu_custom_call.1} parent=11 // pred_check
          %p263 = pneg %p117
        $region14: #{tpu_custom_call.1} parent=11 // pred_check_branch
          %265 = sbr.rel (%p263) target = $region16
        $region15: #{tpu_custom_call.1} parent=11 // pred_region
          _
        $region16: #{tpu_custom_call.1} parent=11 // pred_fallthru
          _
        // Predicated region
        $region17: #{tpu_custom_call.1} parent=11 // pred_check
          %p266 = pneg %p138
        $region18: #{tpu_custom_call.1} parent=11 // pred_check_branch
          %268 = sbr.rel (%p266) target = $region20
        $region19: #{tpu_custom_call.1} parent=11 // pred_region
          _
        $region20: #{tpu_custom_call.1} parent=11 // pred_fallthru
          _
        // Predicated region
        $region21: #{tpu_custom_call.1} parent=11 // pred_check
          %p269 = pneg %p159
        $region22: #{tpu_custom_call.1} parent=11 // pred_check_branch
          %271 = sbr.rel (%p269) target = $region24
        $region23: #{tpu_custom_call.1} parent=11 // pred_region
          _
        $region24: #{tpu_custom_call.1} parent=11 // pred_fallthru
          _
        // Predicated region
        $region25: #{tpu_custom_call.1} parent=11 // pred_check
          %p272 = pneg %p180
        $region26: #{tpu_custom_call.1} parent=11 // pred_check_branch
          %274 = sbr.rel (%p272) target = $region28
        $region27: #{tpu_custom_call.1} parent=11 // pred_region
          _
        $region28: #{tpu_custom_call.1} parent=11 // pred_fallthru
          _
        // Predicated region
        $region29: #{tpu_custom_call.1} parent=11 // pred_check
          %p275 = pneg %p201
        $region30: #{tpu_custom_call.1} parent=11 // pred_check_branch
          %277 = sbr.rel (%p275) target = $region32
        $region31: #{tpu_custom_call.1} parent=11 // pred_region
          _
        $region32: #{tpu_custom_call.1} parent=11 // pred_fallthru
          _
        // Predicated region
        $region33: #{tpu_custom_call.1} parent=11 // pred_check
          %p278 = pneg %p222
        $region34: #{tpu_custom_call.1} parent=11 // pred_check_branch
          %280 = sbr.rel (%p278) target = $region36
        $region35: #{tpu_custom_call.1} parent=11 // pred_region
          _
        $region36: #{tpu_custom_call.1} parent=11 // pred_fallthru
          _
      $region12: #{tpu_custom_call.1} parent=5 // pred_fallthru
        _
      %p281 = scmp.lt.s32.totalorder %s18, 2
      // Predicated region
      $region37: #{tpu_custom_call.1} parent=5 // pred_check
        %p282 = pneg %p281
      $region38: #{tpu_custom_call.1} parent=5 // pred_check_branch
        %284 = sbr.rel (%p282) target = $region40
      $region39: #{tpu_custom_call.1} parent=5 // pred_region
        // Predicated region
        $region41: #{tpu_custom_call.1} parent=39 // pred_check
          %p285 = pneg %p38
        $region42: #{tpu_custom_call.1} parent=39 // pred_check_branch
          %287 = sbr.rel (%p285) target = $region44
        $region43: #{tpu_custom_call.1} parent=39 // pred_region
          %p288 = scmp.lt.s32.totalorder %s18, 1
          %s289 = scalar_select %p288, %s18, 1
          %s290 = smul.addr %s289, 2
          %s291 = smul.addr %s290, 8
          %s292 = scalar_lea.vmem %s0, %s291
        $region44: #{tpu_custom_call.1} parent=39 // pred_fallthru
          _
        // Predicated region
        $region45: #{tpu_custom_call.1} parent=39 // pred_check
          %p293 = pneg %p64
        $region46: #{tpu_custom_call.1} parent=39 // pred_check_branch
          %295 = sbr.rel (%p293) target = $region48
        $region47: #{tpu_custom_call.1} parent=39 // pred_region
          %p296 = scmp.lt.s32.totalorder %s18, 1
          %s297 = scalar_select %p296, %s18, 1
          %s298 = scalar_lea.vmem %s1, %s297
        $region48: #{tpu_custom_call.1} parent=39 // pred_fallthru
          _
        // Predicated region
        $region49: #{tpu_custom_call.1} parent=39 // pred_check
          %p299 = pneg %p90
        $region50: #{tpu_custom_call.1} parent=39 // pred_check_branch
          %301 = sbr.rel (%p299) target = $region52
        $region51: #{tpu_custom_call.1} parent=39 // pred_region
          %p302 = scmp.lt.s32.totalorder %s18, 1
          %s303 = scalar_select %p302, %s18, 1
          %s304 = smul.addr %s303, 8
          %s305 = scalar_lea.vmem %s2, %s304
        $region52: #{tpu_custom_call.1} parent=39 // pred_fallthru
          _
      $region40: #{tpu_custom_call.1} parent=5 // pred_fallthru
        _
      %p306 = scmp.le.s32.totalorder 1, %s18
      %p307 = scmp.lt.s32.totalorder %s18, 3
      %p308 = pnand %p306, %p307
      %p309 = pneg %p308
      // Predicated region
      $region53: #{tpu_custom_call.1} parent=5 // pred_check
        _
      $region54: #{tpu_custom_call.1} parent=5 // pred_check_branch
        %311 = sbr.rel (%p308) target = $region56
      $region55: #{tpu_custom_call.1} parent=5 // pred_region
        %s312 = ssub.s32 %s18, 1
        %p313 = scmp.lt.s32.totalorder %s23, 1
        %s314 = scalar_select %p313, %s23, 1
        %s315 = smul.addr %s314, 2
        %s316 = smul.addr %s315, 8
        %s317 = scalar_lea.vmem %s0, %s316
        %p318 = pneg %p44
        %p319 = pneg %p41
        %p320 = scmp.lt.s32.totalorder %s23, 1
        %s321 = scalar_select %p320, %s23, 1
        %s322 = scalar_lea.vmem %s1, %s321
        %p323 = pneg %p70
        %p324 = pneg %p67
        %p325 = scmp.lt.s32.totalorder %s23, 1
        %s326 = scalar_select %p325, %s23, 1
        %s327 = smul.addr %s326, 8
        %s328 = scalar_lea.vmem %s2, %s327
        %p329 = pneg %p96
        %p330 = pneg %p93
        %p331 = pneg %p117
        %p332 = pneg %p114
        %p333 = pneg %p138
        %p334 = pneg %p135
        %p335 = pneg %p159
        %p336 = pneg %p156
        %p337 = pneg %p180
        %p338 = pneg %p177
        %p339 = pneg %p201
        %p340 = pneg %p198
        %p341 = pneg %p222
        %p342 = pneg %p219
        %p343 = pneg %p248
        %p344 = pneg %p245
        %s345 = sand.u32 %s235, 1
        %s346 = scalar_lea.sflag [#allocation4], %s345
        %s347 = sand.u32 %s235, 1
        %s348 = smul.addr %s347, 16
        %s349 = scalar_lea.vmem [#allocation3], %s348
        %p350 = scmp.lt.s32.totalorder %s23, 1
        %s351 = scalar_select %p350, %s23, 1
        %s352 = smul.addr %s351, 2
        %s353 = smul.addr %s352, 8
        %s354 = scalar_lea.vmem %s0, %s353
        %p355 = scmp.lt.s32.totalorder %s23, 1
        %s356 = scalar_select %p355, %s23, 1
        %s357 = scalar_lea.vmem %s1, %s356
        %p358 = scmp.lt.s32.totalorder %s23, 1
        %s359 = scalar_select %p358, %s23, 1
        %s360 = smul.addr %s359, 8
        %s361 = scalar_lea.vmem %s2, %s360
        %v362 = vld [vmem:[%s357] sm:$0x1]
        %363 = vst [vmem:[#allocation2] sm:$0xff] 0.0
        %364 = vst [vmem:[#allocation2 + $0x8] sm:$0xff] 0.0
        %365 = vst [vmem:[#allocation2 + $0x10] sm:$0xff] 0.0
        %366 = vst [vmem:[#allocation2 + $0x18] sm:$0xff] 0.0
        %367 = vst [vmem:[#allocation2 + $0x20] sm:$0xff] 0.0
        %368 = vst [vmem:[#allocation2 + $0x28] sm:$0xff] 0.0
        %v369 = vld [vmem:[%s354] sm:$0xff]
        %v370 = vld [vmem:[%s354 + $0x8] sm:$0xff]
        %371 = vst [vmem:[#allocation2 + $0x8] sm:$0xff] %v369
        %372 = vst [vmem:[#allocation2 + $0x20] sm:$0xff] %v370
        %v373 = vld [vmem:[%s7] sm:$0xff]
        %v374 = vld [vmem:[%s7 + $0x8] sm:$0xff]
        %v375 = vld [vmem:[%s7 + $0x10] sm:$0xff]
        %v376 = vld [vmem:[%s7 + $0x18] sm:$0xff]
        %v377 = vld [vmem:[%s7 + $0x20] sm:$0xff]
        %v378 = vld [vmem:[%s7 + $0x28] sm:$0xff]
        %v379 = vld [vmem:[%s7 + $0x30] sm:$0xff]
        %v380 = vld [vmem:[%s7 + $0x38] sm:$0xff]
        %v381 = vld [vmem:[%s7 + $0x40] sm:$0xff]
        %v382 = vld [vmem:[%s7 + $0x48] sm:$0xff]
        %v383 = vld [vmem:[%s7 + $0x50] sm:$0xff]
        %v384 = vld [vmem:[%s7 + $0x58] sm:$0xff]
        %v385 = vld [vmem:[%s361] sm:$0xff]
        %v386 = vld [vmem:[%s8] sm:$0xff]
        %v387 = vld [vmem:[%s8 + $0x8] sm:$0xff]
        %v388 = vld [vmem:[%s8 + $0x10] sm:$0xff]
        %v389 = vld [vmem:[%s8 + $0x18] sm:$0xff]
        %v390 = vld [vmem:[%s8 + $0x20] sm:$0xff]
        %v391 = vld [vmem:[%s8 + $0x28] sm:$0xff]
        %v392 = vld [vmem:[%s8 + $0x30] sm:$0xff]
        %v393 = vld [vmem:[%s8 + $0x38] sm:$0xff]
        %v394 = vld [vmem:[%s8 + $0x40] sm:$0xff]
        %v395 = vld [vmem:[%s8 + $0x48] sm:$0xff]
        %v396 = vld [vmem:[%s8 + $0x50] sm:$0xff]
        %v397 = vld [vmem:[%s8 + $0x58] sm:$0xff]
        %399 = vset.pattern.permute.xlu0 0
        %400 = vperm.xlu0 %399, %v386
        %v401 = vpop.permute.xlu0 %400
        %404 = vset.pattern.permute.xlu0 0
        %405 = vperm.xlu0 %404, %v387
        %v406 = vpop.permute.xlu0 %405
        %409 = vset.pattern.permute.xlu0 0
        %410 = vperm.xlu0 %409, %v388
        %v411 = vpop.permute.xlu0 %410
        %414 = vset.pattern.permute.xlu0 0
        %415 = vperm.xlu0 %414, %v389
        %v416 = vpop.permute.xlu0 %415
        %419 = vset.pattern.permute.xlu0 0
        %420 = vperm.xlu0 %419, %v390
        %v421 = vpop.permute.xlu0 %420
        %424 = vset.pattern.permute.xlu0 0
        %425 = vperm.xlu0 %424, %v391
        %v426 = vpop.permute.xlu0 %425
        %429 = vset.pattern.permute.xlu0 0
        %430 = vperm.xlu0 %429, %v392
        %v431 = vpop.permute.xlu0 %430
        %434 = vset.pattern.permute.xlu0 0
        %435 = vperm.xlu0 %434, %v393
        %v436 = vpop.permute.xlu0 %435
        %439 = vset.pattern.permute.xlu0 0
        %440 = vperm.xlu0 %439, %v394
        %v441 = vpop.permute.xlu0 %440
        %444 = vset.pattern.permute.xlu0 0
        %445 = vperm.xlu0 %444, %v395
        %v446 = vpop.permute.xlu0 %445
        %449 = vset.pattern.permute.xlu0 0
        %450 = vperm.xlu0 %449, %v396
        %v451 = vpop.permute.xlu0 %450
        %454 = vset.pattern.permute.xlu0 0
        %455 = vperm.xlu0 %454, %v397
        %v456 = vpop.permute.xlu0 %455
        %vm458 = vcmask 64512
        %v460 = vsel %vm458, %v373, 0
        %v463 = vsel %vm458, %v374, 0
        %v466 = vsel %vm458, %v375, 0
        %v469 = vsel %vm458, %v376, 0
        %v472 = vsel %vm458, %v377, 0
        %v475 = vsel %vm458, %v378, 0
        %v478 = vsel %vm458, %v379, 0
        %v481 = vsel %vm458, %v380, 0
        %v484 = vsel %vm458, %v381, 0
        %v487 = vsel %vm458, %v382, 0
        %v490 = vsel %vm458, %v383, 0
        %v493 = vsel %vm458, %v384, 0
        %495 = vmatprep.subr.mxu0 0.0
        %496 = vmatpush1.msra.mxu0 %v385
        %497 = vmatprep.subr.mxu0 0.0
        %498 = vmatpush1.msra.mxu0 0.0
        %499 = vmatprep.subr.mxu0 0.0
        %500 = vmatpush1.msra.mxu0 0.0
        %501 = vmatprep.subr.mxu0 0.0
        %502 = vmatpush1.msra.mxu0 0.0
        %503 = vmatprep.subr.mxu0 0.0
        %504 = vmatpush1.msra.mxu0 0.0
        %505 = vmatprep.subr.mxu0 0.0
        %506 = vmatpush1.msra.mxu0 0.0
        %507 = vmatprep.subr.mxu0 0.0
        %508 = vmatpush1.msra.mxu0 0.0
        %509 = vmatprep.subr.mxu0 0.0
        %510 = vmatpush1.msra.mxu0 0.0
        %511 = vmatprep.subr.mxu0 0.0
        %512 = vmatpush1.msra.mxu0 0.0
        %513 = vmatprep.subr.mxu0 0.0
        %514 = vmatpush1.msra.mxu0 0.0
        %515 = vmatprep.subr.mxu0 0.0
        %516 = vmatpush1.msra.mxu0 0.0
        %517 = vmatprep.subr.mxu0 0.0
        %518 = vmatpush1.msra.mxu0 0.0
        %519 = vmatprep.subr.mxu0 0.0
        %520 = vmatpush1.msra.mxu0 0.0
        %521 = vmatprep.subr.mxu0 0.0
        %522 = vmatpush1.msra.mxu0 0.0
        %523 = vmatprep.subr.mxu0 0.0
        %524 = vmatpush1.msra.mxu0 0.0
        %525 = vmatprep.subr.mxu0 0.0
        %526 = vmatpush1.msra.mxu0 0.0
        %527 = vmatprep.subr.mxu0 0.0
        %528 = vmatpush1.msra.mxu0 0.0
        %529 = vmatprep.subr.mxu0 0.0
        %530 = vmatpush1.msra.mxu0 0.0
        %531 = vmatprep.subr.mxu0 0.0
        %532 = vmatpush1.msra.mxu0 0.0
        %533 = vmatprep.subr.mxu0 0.0
        %534 = vmatpush1.msra.mxu0 0.0
        %535 = vmatprep.subr.mxu0 0.0
        %536 = vmatpush1.msra.mxu0 0.0
        %537 = vmatprep.subr.mxu0 0.0
        %538 = vmatpush1.msra.mxu0 0.0
        %539 = vmatprep.subr.mxu0 0.0
        %540 = vmatpush1.msra.mxu0 0.0
        %541 = vmatprep.subr.mxu0 0.0
        %542 = vmatpush1.msra.mxu0 0.0
        %543 = vmatprep.subr.mxu0 0.0
        %544 = vmatpush1.msra.mxu0 0.0
        %545 = vmatprep.subr.mxu0 0.0
        %546 = vmatpush1.msra.mxu0 0.0
        %547 = vmatprep.subr.mxu0 0.0
        %548 = vmatpush1.msra.mxu0 0.0
        %549 = vmatprep.subr.mxu0 0.0
        %550 = vmatpush1.msra.mxu0 0.0
        %551 = vmatprep.subr.mxu0 0.0
        %552 = vmatpush1.msra.mxu0 0.0
        %553 = vmatprep.subr.mxu0 0.0
        %554 = vmatpush1.msra.mxu0 0.0
        %555 = vmatprep.subr.mxu0 0.0
        %556 = vmatpush1.msra.mxu0 0.0
        %557 = vmatprep.subr.mxu0 0.0
        %558 = vmatpush1.msra.mxu0 0.0
        %559 = vmatprep.mubr.f32.mxu0 0.0
        %560 = vmatmul.mubr.f32.gmra.mrb[0].mxu0 %v460
        %v561 = vpop.f32.mrb[0].mxu0
        %v562 = vadd.f32 %v401, %v561
        %v563 = vpop.f32.mrb[0].mxu0
        %564 = vmatprep.mubr.f32.mxu0 0.0
        %565 = vmatmul.mubr.f32.gmra.mrb[0].mxu0 %v463
        %v566 = vpop.f32.mrb[0].mxu0
        %v567 = vadd.f32 %v406, %v566
        %v568 = vpop.f32.mrb[0].mxu0
        %569 = vmatprep.mubr.f32.mxu0 0.0
        %570 = vmatmul.mubr.f32.gmra.mrb[0].mxu0 %v466
        %v571 = vpop.f32.mrb[0].mxu0
        %v572 = vadd.f32 %v411, %v571
        %v573 = vpop.f32.mrb[0].mxu0
        %574 = vmatprep.mubr.f32.mxu0 0.0
        %575 = vmatmul.mubr.f32.gmra.mrb[0].mxu0 %v469
        %v576 = vpop.f32.mrb[0].mxu0
        %v577 = vadd.f32 %v416, %v576
        %v578 = vpop.f32.mrb[0].mxu0
        %579 = vmatprep.mubr.f32.mxu0 0.0
        %580 = vmatmul.mubr.f32.gmra.mrb[0].mxu0 %v472
        %v581 = vpop.f32.mrb[0].mxu0
        %v582 = vadd.f32 %v421, %v581
        %v583 = vpop.f32.mrb[0].mxu0
        %584 = vmatprep.mubr.f32.mxu0 0.0
        %585 = vmatmul.mubr.f32.gmra.mrb[0].mxu0 %v475
        %v586 = vpop.f32.mrb[0].mxu0
        %v587 = vadd.f32 %v426, %v586
        %v588 = vpop.f32.mrb[0].mxu0
        %589 = vmatprep.mubr.f32.mxu0 0.0
        %590 = vmatmul.mubr.f32.gmra.mrb[0].mxu0 %v478
        %v591 = vpop.f32.mrb[0].mxu0
        %v592 = vadd.f32 %v431, %v591
        %v593 = vpop.f32.mrb[0].mxu0
        %594 = vmatprep.mubr.f32.mxu0 0.0
        %595 = vmatmul.mubr.f32.gmra.mrb[0].mxu0 %v481
        %v596 = vpop.f32.mrb[0].mxu0
        %v597 = vadd.f32 %v436, %v596
        %v598 = vpop.f32.mrb[0].mxu0
        %599 = vmatprep.mubr.f32.mxu0 0.0
        %600 = vmatmul.mubr.f32.gmra.mrb[0].mxu0 %v484
        %v601 = vpop.f32.mrb[0].mxu0
        %v602 = vadd.f32 %v441, %v601
        %v603 = vpop.f32.mrb[0].mxu0
        %604 = vmatprep.mubr.f32.mxu0 0.0
        %605 = vmatmul.mubr.f32.gmra.mrb[0].mxu0 %v487
        %v606 = vpop.f32.mrb[0].mxu0
        %v607 = vadd.f32 %v446, %v606
        %v608 = vpop.f32.mrb[0].mxu0
        %609 = vmatprep.mubr.f32.mxu0 0.0
        %610 = vmatmul.mubr.f32.gmra.mrb[0].mxu0 %v490
        %v611 = vpop.f32.mrb[0].mxu0
        %v612 = vadd.f32 %v451, %v611
        %v613 = vpop.f32.mrb[0].mxu0
        %614 = vmatprep.mubr.f32.mxu0 0.0
        %615 = vmatmul.mubr.f32.gmra.mrb[0].mxu0 %v493
        %v616 = vpop.f32.mrb[0].mxu0
        %v617 = vadd.f32 %v456, %v616
        %v618 = vpop.f32.mrb[0].mxu0
        %619 = vdwg.mxu0
        %v620 = vld [vmem:[%s3] sm:$0xff]
        %v621 = vld [vmem:[%s3 + $0x8] sm:$0xff]
        %v622 = vld [vmem:[%s3 + $0x10] sm:$0xff]
        %v623 = vld [vmem:[%s3 + $0x18] sm:$0xff]
        %v624 = vld [vmem:[#allocation2] sm:$0xff]
        %v625 = vld [vmem:[#allocation2 + $0x8] sm:$0xff]
        %v626 = vld [vmem:[#allocation2 + $0x18] sm:$0xff]
        %v627 = vld [vmem:[#allocation2 + $0x20] sm:$0xff]
        %s628 = scalar_lea.vmem %s3, 32
        %v629 = vld [vmem:[%s628] sm:$0xff]
        %v630 = vld [vmem:[%s628 + $0x8] sm:$0xff]
        %v631 = vld [vmem:[%s628 + $0x10] sm:$0xff]
        %v632 = vld [vmem:[%s628 + $0x18] sm:$0xff]
        %vm633 = vcmask 130048
        %v635 = vsel %vm633, %v629, 0
        %v638 = vsel %vm633, %v630, 0
        %v641 = vsel %vm633, %v631, 0
        %v644 = vsel %vm633, %v632, 0
        %646 = vmatprep.subr.mxu0 0.0
        %647 = vmatpush1.msra.mxu0 %v625
        %648 = vmatprep.subr.mxu0 0.0
        %649 = vmatpush1.msra.mxu0 %v627
        %650 = vmatprep.subr.mxu0 0.0
        %651 = vmatpush1.msra.mxu0 0.0
        %652 = vmatprep.subr.mxu0 0.0
        %653 = vmatpush1.msra.mxu0 0.0
        %654 = vmatprep.subr.mxu0 0.0
        %655 = vmatpush1.msra.mxu0 0.0
        %656 = vmatprep.subr.mxu0 0.0
        %657 = vmatpush1.msra.mxu0 0.0
        %658 = vmatprep.subr.mxu0 0.0
        %659 = vmatpush1.msra.mxu0 0.0
        %660 = vmatprep.subr.mxu0 0.0
        %661 = vmatpush1.msra.mxu0 0.0
        %662 = vmatprep.subr.mxu0 0.0
        %663 = vmatpush1.msra.mxu0 0.0
        %664 = vmatprep.subr.mxu0 0.0
        %665 = vmatpush1.msra.mxu0 0.0
        %666 = vmatprep.subr.mxu0 0.0
        %667 = vmatpush1.msra.mxu0 0.0
        %668 = vmatprep.subr.mxu0 0.0
        %669 = vmatpush1.msra.mxu0 0.0
        %670 = vmatprep.subr.mxu0 0.0
        %671 = vmatpush1.msra.mxu0 0.0
        %672 = vmatprep.subr.mxu0 0.0
        %673 = vmatpush1.msra.mxu0 0.0
        %674 = vmatprep.subr.mxu0 0.0
        %675 = vmatpush1.msra.mxu0 0.0
        %676 = vmatprep.subr.mxu0 0.0
        %677 = vmatpush1.msra.mxu0 0.0
        %678 = vmatprep.subr.mxu0 0.0
        %679 = vmatpush1.msra.mxu0 0.0
        %680 = vmatprep.subr.mxu0 0.0
        %681 = vmatpush1.msra.mxu0 0.0
        %682 = vmatprep.subr.mxu0 0.0
        %683 = vmatpush1.msra.mxu0 0.0
        %684 = vmatprep.subr.mxu0 0.0
        %685 = vmatpush1.msra.mxu0 0.0
        %686 = vmatprep.subr.mxu0 0.0
        %687 = vmatpush1.msra.mxu0 0.0
        %688 = vmatprep.subr.mxu0 0.0
        %689 = vmatpush1.msra.mxu0 0.0
        %690 = vmatprep.subr.mxu0 0.0
        %691 = vmatpush1.msra.mxu0 0.0
        %692 = vmatprep.subr.mxu0 0.0
        %693 = vmatpush1.msra.mxu0 0.0
        %694 = vmatprep.subr.mxu0 0.0
        %695 = vmatpush1.msra.mxu0 0.0
        %696 = vmatprep.subr.mxu0 0.0
        %697 = vmatpush1.msra.mxu0 0.0
        %698 = vmatprep.subr.mxu0 0.0
        %699 = vmatpush1.msra.mxu0 0.0
        %700 = vmatprep.subr.mxu0 0.0
        %701 = vmatpush1.msra.mxu0 0.0
        %702 = vmatprep.subr.mxu0 0.0
        %703 = vmatpush1.msra.mxu0 0.0
        %704 = vmatprep.subr.mxu0 0.0
        %705 = vmatpush1.msra.mxu0 0.0
        %706 = vmatprep.subr.mxu0 0.0
        %707 = vmatpush1.msra.mxu0 0.0
        %708 = vmatprep.subr.mxu0 0.0
        %709 = vmatpush1.msra.mxu0 0.0
        %710 = vmatprep.mubr.f32.mxu0 0.0
        %711 = vmatmul.mubr.f32.gmra.mrb[0].mxu0 %v635
        %v712 = vpop.f32.mrb[0].mxu0
        %v713 = vadd.f32 0.0, %v712
        %v714 = vpop.f32.mrb[0].mxu0
        %715 = vmatprep.mubr.f32.mxu0 0.0
        %716 = vmatmul.mubr.f32.gmra.mrb[0].mxu0 %v638
        %v717 = vpop.f32.mrb[0].mxu0
        %v718 = vadd.f32 0.0, %v717
        %v719 = vpop.f32.mrb[0].mxu0
        %720 = vmatprep.mubr.f32.mxu0 0.0
        %721 = vmatmul.mubr.f32.gmra.mrb[0].mxu0 %v641
        %v722 = vpop.f32.mrb[0].mxu0
        %v723 = vadd.f32 0.0, %v722
        %v724 = vpop.f32.mrb[0].mxu0
        %725 = vmatprep.mubr.f32.mxu0 0.0
        %726 = vmatmul.mubr.f32.gmra.mrb[0].mxu0 %v644
        %v727 = vpop.f32.mrb[0].mxu0
        %v728 = vadd.f32 0.0, %v727
        %v729 = vpop.f32.mrb[0].mxu0
        %730 = vdwg.mxu0
        %735 = vrot.lane.b32.xlu0 %v624, 1
        %v736 = vpop.permute.xlu0 %735
        %737 = vrot.lane.b32.xlu0 %v625, 1
        %v738 = vpop.permute.xlu0 %737
        %739 = vrot.lane.b32.xlu0 %v626, 1
        %v740 = vpop.permute.xlu0 %739
        %741 = vrot.lane.b32.xlu0 %v627, 1
        %v742 = vpop.permute.xlu0 %741
        %vm743 = vcmask 7168
        %v744 = vsel %vm743, %v736, %v738
        %v745 = vsel %vm743, %v740, %v742
        %v749 = vsel %vm633, %v620, 0
        %v752 = vsel %vm633, %v621, 0
        %v755 = vsel %vm633, %v622, 0
        %v758 = vsel %vm633, %v623, 0
        %760 = vmatprep.subr.mxu0 0.0
        %761 = vmatpush1.msra.mxu0 %v744
        %762 = vmatprep.subr.mxu0 0.0
        %763 = vmatpush1.msra.mxu0 %v745
        %764 = vmatprep.subr.mxu0 0.0
        %765 = vmatpush1.msra.mxu0 0.0
        %766 = vmatprep.subr.mxu0 0.0
        %767 = vmatpush1.msra.mxu0 0.0
        %768 = vmatprep.subr.mxu0 0.0
        %769 = vmatpush1.msra.mxu0 0.0
        %770 = vmatprep.subr.mxu0 0.0
        %771 = vmatpush1.msra.mxu0 0.0
        %772 = vmatprep.subr.mxu0 0.0
        %773 = vmatpush1.msra.mxu0 0.0
        %774 = vmatprep.subr.mxu0 0.0
        %775 = vmatpush1.msra.mxu0 0.0
        %776 = vmatprep.subr.mxu0 0.0
        %777 = vmatpush1.msra.mxu0 0.0
        %778 = vmatprep.subr.mxu0 0.0
        %779 = vmatpush1.msra.mxu0 0.0
        %780 = vmatprep.subr.mxu0 0.0
        %781 = vmatpush1.msra.mxu0 0.0
        %782 = vmatprep.subr.mxu0 0.0
        %783 = vmatpush1.msra.mxu0 0.0
        %784 = vmatprep.subr.mxu0 0.0
        %785 = vmatpush1.msra.mxu0 0.0
        %786 = vmatprep.subr.mxu0 0.0
        %787 = vmatpush1.msra.mxu0 0.0
        %788 = vmatprep.subr.mxu0 0.0
        %789 = vmatpush1.msra.mxu0 0.0
        %790 = vmatprep.subr.mxu0 0.0
        %791 = vmatpush1.msra.mxu0 0.0
        %792 = vmatprep.subr.mxu0 0.0
        %793 = vmatpush1.msra.mxu0 0.0
        %794 = vmatprep.subr.mxu0 0.0
        %795 = vmatpush1.msra.mxu0 0.0
        %796 = vmatprep.subr.mxu0 0.0
        %797 = vmatpush1.msra.mxu0 0.0
        %798 = vmatprep.subr.mxu0 0.0
        %799 = vmatpush1.msra.mxu0 0.0
        %800 = vmatprep.subr.mxu0 0.0
        %801 = vmatpush1.msra.mxu0 0.0
        %802 = vmatprep.subr.mxu0 0.0
        %803 = vmatpush1.msra.mxu0 0.0
        %804 = vmatprep.subr.mxu0 0.0
        %805 = vmatpush1.msra.mxu0 0.0
        %806 = vmatprep.subr.mxu0 0.0
        %807 = vmatpush1.msra.mxu0 0.0
        %808 = vmatprep.subr.mxu0 0.0
        %809 = vmatpush1.msra.mxu0 0.0
        %810 = vmatprep.subr.mxu0 0.0
        %811 = vmatpush1.msra.mxu0 0.0
        %812 = vmatprep.subr.mxu0 0.0
        %813 = vmatpush1.msra.mxu0 0.0
        %814 = vmatprep.subr.mxu0 0.0
        %815 = vmatpush1.msra.mxu0 0.0
        %816 = vmatprep.subr.mxu0 0.0
        %817 = vmatpush1.msra.mxu0 0.0
        %818 = vmatprep.subr.mxu0 0.0
        %819 = vmatpush1.msra.mxu0 0.0
        %820 = vmatprep.subr.mxu0 0.0
        %821 = vmatpush1.msra.mxu0 0.0
        %822 = vmatprep.subr.mxu0 0.0
        %823 = vmatpush1.msra.mxu0 0.0
        %824 = vmatprep.mubr.f32.mxu0 0.0
        %825 = vmatmul.mubr.f32.gmra.mrb[0].mxu0 %v749
        %v826 = vpop.f32.mrb[0].mxu0
        %v827 = vadd.f32 %v713, %v826
        %v828 = vpop.f32.mrb[0].mxu0
        %829 = vmatprep.mubr.f32.mxu0 0.0
        %830 = vmatmul.mubr.f32.gmra.mrb[0].mxu0 %v752
        %v831 = vpop.f32.mrb[0].mxu0
        %v832 = vadd.f32 %v718, %v831
        %v833 = vpop.f32.mrb[0].mxu0
        %834 = vmatprep.mubr.f32.mxu0 0.0
        %835 = vmatmul.mubr.f32.gmra.mrb[0].mxu0 %v755
        %v836 = vpop.f32.mrb[0].mxu0
        %v837 = vadd.f32 %v723, %v836
        %v838 = vpop.f32.mrb[0].mxu0
        %839 = vmatprep.mubr.f32.mxu0 0.0
        %840 = vmatmul.mubr.f32.gmra.mrb[0].mxu0 %v758
        %v841 = vpop.f32.mrb[0].mxu0
        %v842 = vadd.f32 %v728, %v841
        %v843 = vpop.f32.mrb[0].mxu0
        %844 = vdwg.mxu0
        %s845 = scalar_lea.vmem %s3, 64
        %v846 = vld [vmem:[%s845] sm:$0xff]
        %v847 = vld [vmem:[%s845 + $0x8] sm:$0xff]
        %v848 = vld [vmem:[%s845 + $0x10] sm:$0xff]
        %v849 = vld [vmem:[%s845 + $0x18] sm:$0xff]
        %v850 = vld [vmem:[#allocation2 + $0x8] sm:$0xff]
        %v851 = vld [vmem:[#allocation2 + $0x10] sm:$0xff]
        %v852 = vld [vmem:[#allocation2 + $0x20] sm:$0xff]
        %v853 = vld [vmem:[#allocation2 + $0x28] sm:$0xff]
        %858 = vrot.lane.b32.xlu0 %v850, 127
        %v859 = vpop.permute.xlu0 %858
        %860 = vrot.lane.b32.xlu0 %v851, 127
        %v861 = vpop.permute.xlu0 %860
        %862 = vrot.lane.b32.xlu0 %v852, 127
        %v863 = vpop.permute.xlu0 %862
        %864 = vrot.lane.b32.xlu0 %v853, 127
        %v865 = vpop.permute.xlu0 %864
        %vm866 = vcmask 1039360
        %v867 = vsel %vm866, %v859, %v861
        %v868 = vsel %vm866, %v863, %v865
        %v872 = vsel %vm633, %v846, 0
        %v875 = vsel %vm633, %v847, 0
        %v878 = vsel %vm633, %v848, 0
        %v881 = vsel %vm633, %v849, 0
        %883 = vmatprep.subr.mxu0 0.0
        %884 = vmatpush1.msra.mxu0 %v867
        %885 = vmatprep.subr.mxu0 0.0
        %886 = vmatpush1.msra.mxu0 %v868
        %887 = vmatprep.subr.mxu0 0.0
        %888 = vmatpush1.msra.mxu0 0.0
        %889 = vmatprep.subr.mxu0 0.0
        %890 = vmatpush1.msra.mxu0 0.0
        %891 = vmatprep.subr.mxu0 0.0
        %892 = vmatpush1.msra.mxu0 0.0
        %893 = vmatprep.subr.mxu0 0.0
        %894 = vmatpush1.msra.mxu0 0.0
        %895 = vmatprep.subr.mxu0 0.0
        %896 = vmatpush1.msra.mxu0 0.0
        %897 = vmatprep.subr.mxu0 0.0
        %898 = vmatpush1.msra.mxu0 0.0
        %899 = vmatprep.subr.mxu0 0.0
        %900 = vmatpush1.msra.mxu0 0.0
        %901 = vmatprep.subr.mxu0 0.0
        %902 = vmatpush1.msra.mxu0 0.0
        %903 = vmatprep.subr.mxu0 0.0
        %904 = vmatpush1.msra.mxu0 0.0
        %905 = vmatprep.subr.mxu0 0.0
        %906 = vmatpush1.msra.mxu0 0.0
        %907 = vmatprep.subr.mxu0 0.0
        %908 = vmatpush1.msra.mxu0 0.0
        %909 = vmatprep.subr.mxu0 0.0
        %910 = vmatpush1.msra.mxu0 0.0
        %911 = vmatprep.subr.mxu0 0.0
        %912 = vmatpush1.msra.mxu0 0.0
        %913 = vmatprep.subr.mxu0 0.0
        %914 = vmatpush1.msra.mxu0 0.0
        %915 = vmatprep.subr.mxu0 0.0
        %916 = vmatpush1.msra.mxu0 0.0
        %917 = vmatprep.subr.mxu0 0.0
        %918 = vmatpush1.msra.mxu0 0.0
        %919 = vmatprep.subr.mxu0 0.0
        %920 = vmatpush1.msra.mxu0 0.0
        %921 = vmatprep.subr.mxu0 0.0
        %922 = vmatpush1.msra.mxu0 0.0
        %923 = vmatprep.subr.mxu0 0.0
        %924 = vmatpush1.msra.mxu0 0.0
        %925 = vmatprep.subr.mxu0 0.0
        %926 = vmatpush1.msra.mxu0 0.0
        %927 = vmatprep.subr.mxu0 0.0
        %928 = vmatpush1.msra.mxu0 0.0
        %929 = vmatprep.subr.mxu0 0.0
        %930 = vmatpush1.msra.mxu0 0.0
        %931 = vmatprep.subr.mxu0 0.0
        %932 = vmatpush1.msra.mxu0 0.0
        %933 = vmatprep.subr.mxu0 0.0
        %934 = vmatpush1.msra.mxu0 0.0
        %935 = vmatprep.subr.mxu0 0.0
        %936 = vmatpush1.msra.mxu0 0.0
        %937 = vmatprep.subr.mxu0 0.0
        %938 = vmatpush1.msra.mxu0 0.0
        %939 = vmatprep.subr.mxu0 0.0
        %940 = vmatpush1.msra.mxu0 0.0
        %941 = vmatprep.subr.mxu0 0.0
        %942 = vmatpush1.msra.mxu0 0.0
        %943 = vmatprep.subr.mxu0 0.0
        %944 = vmatpush1.msra.mxu0 0.0
        %945 = vmatprep.subr.mxu0 0.0
        %946 = vmatpush1.msra.mxu0 0.0
        %947 = vmatprep.mubr.f32.mxu0 0.0
        %948 = vmatmul.mubr.f32.gmra.mrb[0].mxu0 %v872
        %v949 = vpop.f32.mrb[0].mxu0
        %v950 = vadd.f32 0.0, %v949
        %v951 = vpop.f32.mrb[0].mxu0
        %952 = vmatprep.mubr.f32.mxu0 0.0
        %953 = vmatmul.mubr.f32.gmra.mrb[0].mxu0 %v875
        %v954 = vpop.f32.mrb[0].mxu0
        %v955 = vadd.f32 0.0, %v954
        %v956 = vpop.f32.mrb[0].mxu0
        %957 = vmatprep.mubr.f32.mxu0 0.0
        %958 = vmatmul.mubr.f32.gmra.mrb[0].mxu0 %v878
        %v959 = vpop.f32.mrb[0].mxu0
        %v960 = vadd.f32 0.0, %v959
        %v961 = vpop.f32.mrb[0].mxu0
        %962 = vmatprep.mubr.f32.mxu0 0.0
        %963 = vmatmul.mubr.f32.gmra.mrb[0].mxu0 %v881
        %v964 = vpop.f32.mrb[0].mxu0
        %v965 = vadd.f32 0.0, %v964
        %v966 = vpop.f32.mrb[0].mxu0
        %967 = vdwg.mxu0
        %v968 = vadd.f32 %v827, %v950
        %v969 = vadd.f32 %v832, %v955
        %v970 = vadd.f32 %v837, %v960
        %v971 = vadd.f32 %v842, %v965
        %v972 = vld [vmem:[%s4] sm:$0xff]
        %v973 = vld [vmem:[%s4 + $0x8] sm:$0xff]
        %v974 = vld [vmem:[%s4 + $0x10] sm:$0xff]
        %v975 = vld [vmem:[%s4 + $0x18] sm:$0xff]
        %977 = vset.pattern.permute.xlu0 0
        %978 = vperm.xlu0 %977, %v972
        %v979 = vpop.permute.xlu0 %978
        %982 = vset.pattern.permute.xlu0 0
        %983 = vperm.xlu0 %982, %v973
        %v984 = vpop.permute.xlu0 %983
        %987 = vset.pattern.permute.xlu0 0
        %988 = vperm.xlu0 %987, %v974
        %v989 = vpop.permute.xlu0 %988
        %992 = vset.pattern.permute.xlu0 0
        %993 = vperm.xlu0 %992, %v975
        %v994 = vpop.permute.xlu0 %993
        %v996 = vadd.f32 %v968, %v979
        %v997 = vadd.f32 %v969, %v984
        %v998 = vadd.f32 %v970, %v989
        %v999 = vadd.f32 %v971, %v994
        %v1000 = vadd.f32 %v996, %v562
        %v1001 = vadd.f32 %v997, %v567
        %v1002 = vadd.f32 %v998, %v572
        %v1003 = vadd.f32 %v999, %v577
        %v1004 = vtanh.pop %v1000
        %v1005 = vtanh.pop %v1001
        %v1006 = vxor.u32 %v1002, 2147483648
        %v1007 = vxor.u32 %v1003, 2147483648
        %v1008 = vmul.f32 %v1006, 1.442695
        %v1009 = vpow.pop %v1008
        %v1010 = vmul.f32 %v1007, 1.442695
        %v1011 = vpow.pop %v1010
        %v1012 = vadd.f32 %v1009, 1.0
        %v1013 = vadd.f32 %v1011, 1.0
        %v1014 = vrcp.pop %v1012
        %v1015 = vmul.f32 1.0, %v1014
        %v1016 = vrcp.pop %v1013
        %v1017 = vmul.f32 1.0, %v1016
        %v1018 = vmul.f32 %v1004, %v1015
        %v1019 = vmul.f32 %v1005, %v1017
        %v1020 = vld [vmem:[%s5] sm:$0xff]
        %v1021 = vld [vmem:[%s5 + $0x8] sm:$0xff]
        %v1022 = vld [vmem:[%s5 + $0x10] sm:$0xff]
        %v1023 = vld [vmem:[%s5 + $0x18] sm:$0xff]
        %v1024 = vld [vmem:[%s6] sm:$0xff]
        %v1025 = vld [vmem:[%s6 + $0x8] sm:$0xff]
        %v1026 = vld [vmem:[%s6 + $0x10] sm:$0xff]
        %v1027 = vld [vmem:[%s6 + $0x18] sm:$0xff]
        %1029 = vset.pattern.permute.xlu0 0
        %1030 = vperm.xlu0 %1029, %v1024
        %v1031 = vpop.permute.xlu0 %1030
        %1034 = vset.pattern.permute.xlu0 0
        %1035 = vperm.xlu0 %1034, %v1025
        %v1036 = vpop.permute.xlu0 %1035
        %1039 = vset.pattern.permute.xlu0 0
        %1040 = vperm.xlu0 %1039, %v1026
        %v1041 = vpop.permute.xlu0 %1040
        %1044 = vset.pattern.permute.xlu0 0
        %1045 = vperm.xlu0 %1044, %v1027
        %v1046 = vpop.permute.xlu0 %1045
        %v1049 = vsel %vm633, %v1020, 0
        %v1052 = vsel %vm633, %v1021, 0
        %v1055 = vsel %vm633, %v1022, 0
        %v1058 = vsel %vm633, %v1023, 0
        %1060 = vmatprep.subr.mxu0 0.0
        %1061 = vmatpush1.msra.mxu0 %v1018
        %1062 = vmatprep.subr.mxu0 0.0
        %1063 = vmatpush1.msra.mxu0 %v1019
        %1064 = vmatprep.subr.mxu0 0.0
        %1065 = vmatpush1.msra.mxu0 0.0
        %1066 = vmatprep.subr.mxu0 0.0
        %1067 = vmatpush1.msra.mxu0 0.0
        %1068 = vmatprep.subr.mxu0 0.0
        %1069 = vmatpush1.msra.mxu0 0.0
        %1070 = vmatprep.subr.mxu0 0.0
        %1071 = vmatpush1.msra.mxu0 0.0
        %1072 = vmatprep.subr.mxu0 0.0
        %1073 = vmatpush1.msra.mxu0 0.0
        %1074 = vmatprep.subr.mxu0 0.0
        %1075 = vmatpush1.msra.mxu0 0.0
        %1076 = vmatprep.subr.mxu0 0.0
        %1077 = vmatpush1.msra.mxu0 0.0
        %1078 = vmatprep.subr.mxu0 0.0
        %1079 = vmatpush1.msra.mxu0 0.0
        %1080 = vmatprep.subr.mxu0 0.0
        %1081 = vmatpush1.msra.mxu0 0.0
        %1082 = vmatprep.subr.mxu0 0.0
        %1083 = vmatpush1.msra.mxu0 0.0
        %1084 = vmatprep.subr.mxu0 0.0
        %1085 = vmatpush1.msra.mxu0 0.0
        %1086 = vmatprep.subr.mxu0 0.0
        %1087 = vmatpush1.msra.mxu0 0.0
        %1088 = vmatprep.subr.mxu0 0.0
        %1089 = vmatpush1.msra.mxu0 0.0
        %1090 = vmatprep.subr.mxu0 0.0
        %1091 = vmatpush1.msra.mxu0 0.0
        %1092 = vmatprep.subr.mxu0 0.0
        %1093 = vmatpush1.msra.mxu0 0.0
        %1094 = vmatprep.subr.mxu0 0.0
        %1095 = vmatpush1.msra.mxu0 0.0
        %1096 = vmatprep.subr.mxu0 0.0
        %1097 = vmatpush1.msra.mxu0 0.0
        %1098 = vmatprep.subr.mxu0 0.0
        %1099 = vmatpush1.msra.mxu0 0.0
        %1100 = vmatprep.subr.mxu0 0.0
        %1101 = vmatpush1.msra.mxu0 0.0
        %1102 = vmatprep.subr.mxu0 0.0
        %1103 = vmatpush1.msra.mxu0 0.0
        %1104 = vmatprep.subr.mxu0 0.0
        %1105 = vmatpush1.msra.mxu0 0.0
        %1106 = vmatprep.subr.mxu0 0.0
        %1107 = vmatpush1.msra.mxu0 0.0
        %1108 = vmatprep.subr.mxu0 0.0
        %1109 = vmatpush1.msra.mxu0 0.0
        %1110 = vmatprep.subr.mxu0 0.0
        %1111 = vmatpush1.msra.mxu0 0.0
        %1112 = vmatprep.subr.mxu0 0.0
        %1113 = vmatpush1.msra.mxu0 0.0
        %1114 = vmatprep.subr.mxu0 0.0
        %1115 = vmatpush1.msra.mxu0 0.0
        %1116 = vmatprep.subr.mxu0 0.0
        %1117 = vmatpush1.msra.mxu0 0.0
        %1118 = vmatprep.subr.mxu0 0.0
        %1119 = vmatpush1.msra.mxu0 0.0
        %1120 = vmatprep.subr.mxu0 0.0
        %1121 = vmatpush1.msra.mxu0 0.0
        %1122 = vmatprep.subr.mxu0 0.0
        %1123 = vmatpush1.msra.mxu0 0.0
        %1124 = vmatprep.mubr.f32.mxu0 0.0
        %1125 = vmatmul.mubr.f32.gmra.mrb[0].mxu0 %v1049
        %v1126 = vpop.f32.mrb[0].mxu0
        %v1127 = vadd.f32 %v1031, %v1126
        %v1128 = vpop.f32.mrb[0].mxu0
        %1129 = vmatprep.mubr.f32.mxu0 0.0
        %1130 = vmatmul.mubr.f32.gmra.mrb[0].mxu0 %v1052
        %v1131 = vpop.f32.mrb[0].mxu0
        %v1132 = vadd.f32 %v1036, %v1131
        %v1133 = vpop.f32.mrb[0].mxu0
        %1134 = vmatprep.mubr.f32.mxu0 0.0
        %1135 = vmatmul.mubr.f32.gmra.mrb[0].mxu0 %v1055
        %v1136 = vpop.f32.mrb[0].mxu0
        %v1137 = vadd.f32 %v1041, %v1136
        %v1138 = vpop.f32.mrb[0].mxu0
        %1139 = vmatprep.mubr.f32.mxu0 0.0
        %1140 = vmatmul.mubr.f32.gmra.mrb[0].mxu0 %v1058
        %v1141 = vpop.f32.mrb[0].mxu0
        %v1142 = vadd.f32 %v1046, %v1141
        %v1143 = vpop.f32.mrb[0].mxu0
        %1144 = vdwg.mxu0
        %v1145 = vadd.f32 %v625, %v1127
        %v1146 = vadd.f32 %v627, %v1132
        %v1148 = vlaneseq
        %v1149 = vshrl.u32 %v1148, 7
        %v1150 = vsub.s32 0, %v1149
        %v1151 = vrot.slane %v362, %v1150
        %v1153 = vmul.f32 %v1145, %v1151
        %v1154 = vmul.f32 %v1146, %v1151
        %1155 = vst [vmem:[#allocation2 + $0x8] sm:$0xff] %v1153
        %1156 = vst [vmem:[#allocation2 + $0x20] sm:$0xff] %v1154
        %v1157 = vadd.f32 %v1137, 0.0
        %v1158 = vadd.f32 %v1142, 0.0
        %s1159 = scalar_lea.vmem %s3, 96
        %v1160 = vld [vmem:[%s1159] sm:$0xff]
        %v1161 = vld [vmem:[%s1159 + $0x8] sm:$0xff]
        %v1162 = vld [vmem:[%s1159 + $0x10] sm:$0xff]
        %v1163 = vld [vmem:[%s1159 + $0x18] sm:$0xff]
        %v1164 = vld [vmem:[#allocation2] sm:$0xff]
        %v1165 = vld [vmem:[#allocation2 + $0x8] sm:$0xff]
        %v1166 = vld [vmem:[#allocation2 + $0x18] sm:$0xff]
        %v1167 = vld [vmem:[#allocation2 + $0x20] sm:$0xff]
        %s1168 = scalar_lea.vmem %s3, 128
        %v1169 = vld [vmem:[%s1168] sm:$0xff]
        %v1170 = vld [vmem:[%s1168 + $0x8] sm:$0xff]
        %v1171 = vld [vmem:[%s1168 + $0x10] sm:$0xff]
        %v1172 = vld [vmem:[%s1168 + $0x18] sm:$0xff]
        %v1174 = vsel %vm633, %v1169, 0
        %v1177 = vsel %vm633, %v1170, 0
        %v1180 = vsel %vm633, %v1171, 0
        %v1183 = vsel %vm633, %v1172, 0
        %1185 = vmatprep.subr.mxu0 0.0
        %1186 = vmatpush1.msra.mxu0 %v1165
        %1187 = vmatprep.subr.mxu0 0.0
        %1188 = vmatpush1.msra.mxu0 %v1167
        %1189 = vmatprep.subr.mxu0 0.0
        %1190 = vmatpush1.msra.mxu0 0.0
        %1191 = vmatprep.subr.mxu0 0.0
        %1192 = vmatpush1.msra.mxu0 0.0
        %1193 = vmatprep.subr.mxu0 0.0
        %1194 = vmatpush1.msra.mxu0 0.0
        %1195 = vmatprep.subr.mxu0 0.0
        %1196 = vmatpush1.msra.mxu0 0.0
        %1197 = vmatprep.subr.mxu0 0.0
        %1198 = vmatpush1.msra.mxu0 0.0
        %1199 = vmatprep.subr.mxu0 0.0
        %1200 = vmatpush1.msra.mxu0 0.0
        %1201 = vmatprep.subr.mxu0 0.0
        %1202 = vmatpush1.msra.mxu0 0.0
        %1203 = vmatprep.subr.mxu0 0.0
        %1204 = vmatpush1.msra.mxu0 0.0
        %1205 = vmatprep.subr.mxu0 0.0
        %1206 = vmatpush1.msra.mxu0 0.0
        %1207 = vmatprep.subr.mxu0 0.0
        %1208 = vmatpush1.msra.mxu0 0.0
        %1209 = vmatprep.subr.mxu0 0.0
        %1210 = vmatpush1.msra.mxu0 0.0
        %1211 = vmatprep.subr.mxu0 0.0
        %1212 = vmatpush1.msra.mxu0 0.0
        %1213 = vmatprep.subr.mxu0 0.0
        %1214 = vmatpush1.msra.mxu0 0.0
        %1215 = vmatprep.subr.mxu0 0.0
        %1216 = vmatpush1.msra.mxu0 0.0
        %1217 = vmatprep.subr.mxu0 0.0
        %1218 = vmatpush1.msra.mxu0 0.0
        %1219 = vmatprep.subr.mxu0 0.0
        %1220 = vmatpush1.msra.mxu0 0.0
        %1221 = vmatprep.subr.mxu0 0.0
        %1222 = vmatpush1.msra.mxu0 0.0
        %1223 = vmatprep.subr.mxu0 0.0
        %1224 = vmatpush1.msra.mxu0 0.0
        %1225 = vmatprep.subr.mxu0 0.0
        %1226 = vmatpush1.msra.mxu0 0.0
        %1227 = vmatprep.subr.mxu0 0.0
        %1228 = vmatpush1.msra.mxu0 0.0
        %1229 = vmatprep.subr.mxu0 0.0
        %1230 = vmatpush1.msra.mxu0 0.0
        %1231 = vmatprep.subr.mxu0 0.0
        %1232 = vmatpush1.msra.mxu0 0.0
        %1233 = vmatprep.subr.mxu0 0.0
        %1234 = vmatpush1.msra.mxu0 0.0
        %1235 = vmatprep.subr.mxu0 0.0
        %1236 = vmatpush1.msra.mxu0 0.0
        %1237 = vmatprep.subr.mxu0 0.0
        %1238 = vmatpush1.msra.mxu0 0.0
        %1239 = vmatprep.subr.mxu0 0.0
        %1240 = vmatpush1.msra.mxu0 0.0
        %1241 = vmatprep.subr.mxu0 0.0
        %1242 = vmatpush1.msra.mxu0 0.0
        %1243 = vmatprep.subr.mxu0 0.0
        %1244 = vmatpush1.msra.mxu0 0.0
        %1245 = vmatprep.subr.mxu0 0.0
        %1246 = vmatpush1.msra.mxu0 0.0
        %1247 = vmatprep.subr.mxu0 0.0
        %1248 = vmatpush1.msra.mxu0 0.0
        %1249 = vmatprep.mubr.f32.mxu0 0.0
        %1250 = vmatmul.mubr.f32.gmra.mrb[0].mxu0 %v1174
        %v1251 = vpop.f32.mrb[0].mxu0
        %v1252 = vadd.f32 0.0, %v1251
        %v1253 = vpop.f32.mrb[0].mxu0
        %1254 = vmatprep.mubr.f32.mxu0 0.0
        %1255 = vmatmul.mubr.f32.gmra.mrb[0].mxu0 %v1177
        %v1256 = vpop.f32.mrb[0].mxu0
        %v1257 = vadd.f32 0.0, %v1256
        %v1258 = vpop.f32.mrb[0].mxu0
        %1259 = vmatprep.mubr.f32.mxu0 0.0
        %1260 = vmatmul.mubr.f32.gmra.mrb[0].mxu0 %v1180
        %v1261 = vpop.f32.mrb[0].mxu0
        %v1262 = vadd.f32 0.0, %v1261
        %v1263 = vpop.f32.mrb[0].mxu0
        %1264 = vmatprep.mubr.f32.mxu0 0.0
        %1265 = vmatmul.mubr.f32.gmra.mrb[0].mxu0 %v1183
        %v1266 = vpop.f32.mrb[0].mxu0
        %v1267 = vadd.f32 0.0, %v1266
        %v1268 = vpop.f32.mrb[0].mxu0
        %1269 = vdwg.mxu0
        %1274 = vrot.lane.b32.xlu0 %v1164, 2
        %v1275 = vpop.permute.xlu0 %1274
        %1276 = vrot.lane.b32.xlu0 %v1165, 2
        %v1277 = vpop.permute.xlu0 %1276
        %1278 = vrot.lane.b32.xlu0 %v1166, 2
        %v1279 = vpop.permute.xlu0 %1278
        %1280 = vrot.lane.b32.xlu0 %v1167, 2
        %v1281 = vpop.permute.xlu0 %1280
        %vm1282 = vcmask 15360
        %v1283 = vsel %vm1282, %v1275, %v1277
        %v1284 = vsel %vm1282, %v1279, %v1281
        %v1288 = vsel %vm633, %v1160, 0
        %v1291 = vsel %vm633, %v1161, 0
        %v1294 = vsel %vm633, %v1162, 0
        %v1297 = vsel %vm633, %v1163, 0
        %1299 = vmatprep.subr.mxu0 0.0
        %1300 = vmatpush1.msra.mxu0 %v1283
        %1301 = vmatprep.subr.mxu0 0.0
        %1302 = vmatpush1.msra.mxu0 %v1284
        %1303 = vmatprep.subr.mxu0 0.0
        %1304 = vmatpush1.msra.mxu0 0.0
        %1305 = vmatprep.subr.mxu0 0.0
        %1306 = vmatpush1.msra.mxu0 0.0
        %1307 = vmatprep.subr.mxu0 0.0
        %1308 = vmatpush1.msra.mxu0 0.0
        %1309 = vmatprep.subr.mxu0 0.0
        %1310 = vmatpush1.msra.mxu0 0.0
        %1311 = vmatprep.subr.mxu0 0.0
        %1312 = vmatpush1.msra.mxu0 0.0
        %1313 = vmatprep.subr.mxu0 0.0
        %1314 = vmatpush1.msra.mxu0 0.0
        %1315 = vmatprep.subr.mxu0 0.0
        %1316 = vmatpush1.msra.mxu0 0.0
        %1317 = vmatprep.subr.mxu0 0.0
        %1318 = vmatpush1.msra.mxu0 0.0
        %1319 = vmatprep.subr.mxu0 0.0
        %1320 = vmatpush1.msra.mxu0 0.0
        %1321 = vmatprep.subr.mxu0 0.0
        %1322 = vmatpush1.msra.mxu0 0.0
        %1323 = vmatprep.subr.mxu0 0.0
        %1324 = vmatpush1.msra.mxu0 0.0
        %1325 = vmatprep.subr.mxu0 0.0
        %1326 = vmatpush1.msra.mxu0 0.0
        %1327 = vmatprep.subr.mxu0 0.0
        %1328 = vmatpush1.msra.mxu0 0.0
        %1329 = vmatprep.subr.mxu0 0.0
        %1330 = vmatpush1.msra.mxu0 0.0
        %1331 = vmatprep.subr.mxu0 0.0
        %1332 = vmatpush1.msra.mxu0 0.0
        %1333 = vmatprep.subr.mxu0 0.0
        %1334 = vmatpush1.msra.mxu0 0.0
        %1335 = vmatprep.subr.mxu0 0.0
        %1336 = vmatpush1.msra.mxu0 0.0
        %1337 = vmatprep.subr.mxu0 0.0
        %1338 = vmatpush1.msra.mxu0 0.0
        %1339 = vmatprep.subr.mxu0 0.0
        %1340 = vmatpush1.msra.mxu0 0.0
        %1341 = vmatprep.subr.mxu0 0.0
        %1342 = vmatpush1.msra.mxu0 0.0
        %1343 = vmatprep.subr.mxu0 0.0
        %1344 = vmatpush1.msra.mxu0 0.0
        %1345 = vmatprep.subr.mxu0 0.0
        %1346 = vmatpush1.msra.mxu0 0.0
        %1347 = vmatprep.subr.mxu0 0.0
        %1348 = vmatpush1.msra.mxu0 0.0
        %1349 = vmatprep.subr.mxu0 0.0
        %1350 = vmatpush1.msra.mxu0 0.0
        %1351 = vmatprep.subr.mxu0 0.0
        %1352 = vmatpush1.msra.mxu0 0.0
        %1353 = vmatprep.subr.mxu0 0.0
        %1354 = vmatpush1.msra.mxu0 0.0
        %1355 = vmatprep.subr.mxu0 0.0
        %1356 = vmatpush1.msra.mxu0 0.0
        %1357 = vmatprep.subr.mxu0 0.0
        %1358 = vmatpush1.msra.mxu0 0.0
        %1359 = vmatprep.subr.mxu0 0.0
        %1360 = vmatpush1.msra.mxu0 0.0
        %1361 = vmatprep.subr.mxu0 0.0
        %1362 = vmatpush1.msra.mxu0 0.0
        %1363 = vmatprep.mubr.f32.mxu0 0.0
        %1364 = vmatmul.mubr.f32.gmra.mrb[0].mxu0 %v1288
        %v1365 = vpop.f32.mrb[0].mxu0
        %v1366 = vadd.f32 %v1252, %v1365
        %v1367 = vpop.f32.mrb[0].mxu0
        %1368 = vmatprep.mubr.f32.mxu0 0.0
        %1369 = vmatmul.mubr.f32.gmra.mrb[0].mxu0 %v1291
        %v1370 = vpop.f32.mrb[0].mxu0
        %v1371 = vadd.f32 %v1257, %v1370
        %v1372 = vpop.f32.mrb[0].mxu0
        %1373 = vmatprep.mubr.f32.mxu0 0.0
        %1374 = vmatmul.mubr.f32.gmra.mrb[0].mxu0 %v1294
        %v1375 = vpop.f32.mrb[0].mxu0
        %v1376 = vadd.f32 %v1262, %v1375
        %v1377 = vpop.f32.mrb[0].mxu0
        %1378 = vmatprep.mubr.f32.mxu0 0.0
        %1379 = vmatmul.mubr.f32.gmra.mrb[0].mxu0 %v1297
        %v1380 = vpop.f32.mrb[0].mxu0
        %v1381 = vadd.f32 %v1267, %v1380
        %v1382 = vpop.f32.mrb[0].mxu0
        %1383 = vdwg.mxu0
        %s1384 = scalar_lea.vmem %s3, 160
        %v1385 = vld [vmem:[%s1384] sm:$0xff]
        %v1386 = vld [vmem:[%s1384 + $0x8] sm:$0xff]
        %v1387 = vld [vmem:[%s1384 + $0x10] sm:$0xff]
        %v1388 = vld [vmem:[%s1384 + $0x18] sm:$0xff]
        %v1389 = vld [vmem:[#allocation2 + $0x8] sm:$0xff]
        %v1390 = vld [vmem:[#allocation2 + $0x10] sm:$0xff]
        %v1391 = vld [vmem:[#allocation2 + $0x20] sm:$0xff]
        %v1392 = vld [vmem:[#allocation2 + $0x28] sm:$0xff]
        %1397 = vrot.lane.b32.xlu0 %v1389, 126
        %v1398 = vpop.permute.xlu0 %1397
        %1399 = vrot.lane.b32.xlu0 %v1390, 126
        %v1400 = vpop.permute.xlu0 %1399
        %1401 = vrot.lane.b32.xlu0 %v1391, 126
        %v1402 = vpop.permute.xlu0 %1401
        %1403 = vrot.lane.b32.xlu0 %v1392, 126
        %v1404 = vpop.permute.xlu0 %1403
        %vm1405 = vcmask 1031168
        %v1406 = vsel %vm1405, %v1398, %v1400
        %v1407 = vsel %vm1405, %v1402, %v1404
        %v1411 = vsel %vm633, %v1385, 0
        %v1414 = vsel %vm633, %v1386, 0
        %v1417 = vsel %vm633, %v1387, 0
        %v1420 = vsel %vm633, %v1388, 0
        %1422 = vmatprep.subr.mxu0 0.0
        %1423 = vmatpush1.msra.mxu0 %v1406
        %1424 = vmatprep.subr.mxu0 0.0
        %1425 = vmatpush1.msra.mxu0 %v1407
        %1426 = vmatprep.subr.mxu0 0.0
        %1427 = vmatpush1.msra.mxu0 0.0
        %1428 = vmatprep.subr.mxu0 0.0
        %1429 = vmatpush1.msra.mxu0 0.0
        %1430 = vmatprep.subr.mxu0 0.0
        %1431 = vmatpush1.msra.mxu0 0.0
        %1432 = vmatprep.subr.mxu0 0.0
        %1433 = vmatpush1.msra.mxu0 0.0
        %1434 = vmatprep.subr.mxu0 0.0
        %1435 = vmatpush1.msra.mxu0 0.0
        %1436 = vmatprep.subr.mxu0 0.0
        %1437 = vmatpush1.msra.mxu0 0.0
        %1438 = vmatprep.subr.mxu0 0.0
        %1439 = vmatpush1.msra.mxu0 0.0
        %1440 = vmatprep.subr.mxu0 0.0
        %1441 = vmatpush1.msra.mxu0 0.0
        %1442 = vmatprep.subr.mxu0 0.0
        %1443 = vmatpush1.msra.mxu0 0.0
        %1444 = vmatprep.subr.mxu0 0.0
        %1445 = vmatpush1.msra.mxu0 0.0
        %1446 = vmatprep.subr.mxu0 0.0
        %1447 = vmatpush1.msra.mxu0 0.0
        %1448 = vmatprep.subr.mxu0 0.0
        %1449 = vmatpush1.msra.mxu0 0.0
        %1450 = vmatprep.subr.mxu0 0.0
        %1451 = vmatpush1.msra.mxu0 0.0
        %1452 = vmatprep.subr.mxu0 0.0
        %1453 = vmatpush1.msra.mxu0 0.0
        %1454 = vmatprep.subr.mxu0 0.0
        %1455 = vmatpush1.msra.mxu0 0.0
        %1456 = vmatprep.subr.mxu0 0.0
        %1457 = vmatpush1.msra.mxu0 0.0
        %1458 = vmatprep.subr.mxu0 0.0
        %1459 = vmatpush1.msra.mxu0 0.0
        %1460 = vmatprep.subr.mxu0 0.0
        %1461 = vmatpush1.msra.mxu0 0.0
        %1462 = vmatprep.subr.mxu0 0.0
        %1463 = vmatpush1.msra.mxu0 0.0
        %1464 = vmatprep.subr.mxu0 0.0
        %1465 = vmatpush1.msra.mxu0 0.0
        %1466 = vmatprep.subr.mxu0 0.0
        %1467 = vmatpush1.msra.mxu0 0.0
        %1468 = vmatprep.subr.mxu0 0.0
        %1469 = vmatpush1.msra.mxu0 0.0
        %1470 = vmatprep.subr.mxu0 0.0
        %1471 = vmatpush1.msra.mxu0 0.0
        %1472 = vmatprep.subr.mxu0 0.0
        %1473 = vmatpush1.msra.mxu0 0.0
        %1474 = vmatprep.subr.mxu0 0.0
        %1475 = vmatpush1.msra.mxu0 0.0
        %1476 = vmatprep.subr.mxu0 0.0
        %1477 = vmatpush1.msra.mxu0 0.0
        %1478 = vmatprep.subr.mxu0 0.0
        %1479 = vmatpush1.msra.mxu0 0.0
        %1480 = vmatprep.subr.mxu0 0.0
        %1481 = vmatpush1.msra.mxu0 0.0
        %1482 = vmatprep.subr.mxu0 0.0
        %1483 = vmatpush1.msra.mxu0 0.0
        %1484 = vmatprep.subr.mxu0 0.0
        %1485 = vmatpush1.msra.mxu0 0.0
        %1486 = vmatprep.mubr.f32.mxu0 0.0
        %1487 = vmatmul.mubr.f32.gmra.mrb[0].mxu0 %v1411
        %v1488 = vpop.f32.mrb[0].mxu0
        %v1489 = vadd.f32 0.0, %v1488
        %v1490 = vpop.f32.mrb[0].mxu0
        %1491 = vmatprep.mubr.f32.mxu0 0.0
        %1492 = vmatmul.mubr.f32.gmra.mrb[0].mxu0 %v1414
        %v1493 = vpop.f32.mrb[0].mxu0
        %v1494 = vadd.f32 0.0, %v1493
        %v1495 = vpop.f32.mrb[0].mxu0
        %1496 = vmatprep.mubr.f32.mxu0 0.0
        %1497 = vmatmul.mubr.f32.gmra.mrb[0].mxu0 %v1417
        %v1498 = vpop.f32.mrb[0].mxu0
        %v1499 = vadd.f32 0.0, %v1498
        %v1500 = vpop.f32.mrb[0].mxu0
        %1501 = vmatprep.mubr.f32.mxu0 0.0
        %1502 = vmatmul.mubr.f32.gmra.mrb[0].mxu0 %v1420
        %v1503 = vpop.f32.mrb[0].mxu0
        %v1504 = vadd.f32 0.0, %v1503
        %v1505 = vpop.f32.mrb[0].mxu0
        %1506 = vdwg.mxu0
        %v1507 = vadd.f32 %v1366, %v1489
        %v1508 = vadd.f32 %v1371, %v1494
        %v1509 = vadd.f32 %v1376, %v1499
        %v1510 = vadd.f32 %v1381, %v1504
        %s1511 = scalar_lea.vmem %s4, 32
        %v1512 = vld [vmem:[%s1511] sm:$0xff]
        %v1513 = vld [vmem:[%s1511 + $0x8] sm:$0xff]
        %v1514 = vld [vmem:[%s1511 + $0x10] sm:$0xff]
        %v1515 = vld [vmem:[%s1511 + $0x18] sm:$0xff]
        %1517 = vset.pattern.permute.xlu0 0
        %1518 = vperm.xlu0 %1517, %v1512
        %v1519 = vpop.permute.xlu0 %1518
        %1522 = vset.pattern.permute.xlu0 0
        %1523 = vperm.xlu0 %1522, %v1513
        %v1524 = vpop.permute.xlu0 %1523
        %1527 = vset.pattern.permute.xlu0 0
        %1528 = vperm.xlu0 %1527, %v1514
        %v1529 = vpop.permute.xlu0 %1528
        %1532 = vset.pattern.permute.xlu0 0
        %1533 = vperm.xlu0 %1532, %v1515
        %v1534 = vpop.permute.xlu0 %1533
        %v1536 = vadd.f32 %v1507, %v1519
        %v1537 = vadd.f32 %v1508, %v1524
        %v1538 = vadd.f32 %v1509, %v1529
        %v1539 = vadd.f32 %v1510, %v1534
        %v1540 = vadd.f32 %v1536, %v582
        %v1541 = vadd.f32 %v1537, %v587
        %v1542 = vadd.f32 %v1538, %v592
        %v1543 = vadd.f32 %v1539, %v597
        %v1544 = vtanh.pop %v1540
        %v1545 = vtanh.pop %v1541
        %v1546 = vxor.u32 %v1542, 2147483648
        %v1547 = vxor.u32 %v1543, 2147483648
        %v1548 = vmul.f32 %v1546, 1.442695
        %v1549 = vpow.pop %v1548
        %v1550 = vmul.f32 %v1547, 1.442695
        %v1551 = vpow.pop %v1550
        %v1552 = vadd.f32 %v1549, 1.0
        %v1553 = vadd.f32 %v1551, 1.0
        %v1554 = vrcp.pop %v1552
        %v1555 = vmul.f32 1.0, %v1554
        %v1556 = vrcp.pop %v1553
        %v1557 = vmul.f32 1.0, %v1556
        %v1558 = vmul.f32 %v1544, %v1555
        %v1559 = vmul.f32 %v1545, %v1557
        %s1560 = scalar_lea.vmem %s5, 32
        %v1561 = vld [vmem:[%s1560] sm:$0xff]
        %v1562 = vld [vmem:[%s1560 + $0x8] sm:$0xff]
        %v1563 = vld [vmem:[%s1560 + $0x10] sm:$0xff]
        %v1564 = vld [vmem:[%s1560 + $0x18] sm:$0xff]
        %s1565 = scalar_lea.vmem %s6, 32
        %v1566 = vld [vmem:[%s1565] sm:$0xff]
        %v1567 = vld [vmem:[%s1565 + $0x8] sm:$0xff]
        %v1568 = vld [vmem:[%s1565 + $0x10] sm:$0xff]
        %v1569 = vld [vmem:[%s1565 + $0x18] sm:$0xff]
        %1571 = vset.pattern.permute.xlu0 0
        %1572 = vperm.xlu0 %1571, %v1566
        %v1573 = vpop.permute.xlu0 %1572
        %1576 = vset.pattern.permute.xlu0 0
        %1577 = vperm.xlu0 %1576, %v1567
        %v1578 = vpop.permute.xlu0 %1577
        %1581 = vset.pattern.permute.xlu0 0
        %1582 = vperm.xlu0 %1581, %v1568
        %v1583 = vpop.permute.xlu0 %1582
        %1586 = vset.pattern.permute.xlu0 0
        %1587 = vperm.xlu0 %1586, %v1569
        %v1588 = vpop.permute.xlu0 %1587
        %v1591 = vsel %vm633, %v1561, 0
        %v1594 = vsel %vm633, %v1562, 0
        %v1597 = vsel %vm633, %v1563, 0
        %v1600 = vsel %vm633, %v1564, 0
        %1602 = vmatprep.subr.mxu0 0.0
        %1603 = vmatpush1.msra.mxu0 %v1558
        %1604 = vmatprep.subr.mxu0 0.0
        %1605 = vmatpush1.msra.mxu0 %v1559
        %1606 = vmatprep.subr.mxu0 0.0
        %1607 = vmatpush1.msra.mxu0 0.0
        %1608 = vmatprep.subr.mxu0 0.0
        %1609 = vmatpush1.msra.mxu0 0.0
        %1610 = vmatprep.subr.mxu0 0.0
        %1611 = vmatpush1.msra.mxu0 0.0
        %1612 = vmatprep.subr.mxu0 0.0
        %1613 = vmatpush1.msra.mxu0 0.0
        %1614 = vmatprep.subr.mxu0 0.0
        %1615 = vmatpush1.msra.mxu0 0.0
        %1616 = vmatprep.subr.mxu0 0.0
        %1617 = vmatpush1.msra.mxu0 0.0
        %1618 = vmatprep.subr.mxu0 0.0
        %1619 = vmatpush1.msra.mxu0 0.0
        %1620 = vmatprep.subr.mxu0 0.0
        %1621 = vmatpush1.msra.mxu0 0.0
        %1622 = vmatprep.subr.mxu0 0.0
        %1623 = vmatpush1.msra.mxu0 0.0
        %1624 = vmatprep.subr.mxu0 0.0
        %1625 = vmatpush1.msra.mxu0 0.0
        %1626 = vmatprep.subr.mxu0 0.0
        %1627 = vmatpush1.msra.mxu0 0.0
        %1628 = vmatprep.subr.mxu0 0.0
        %1629 = vmatpush1.msra.mxu0 0.0
        %1630 = vmatprep.subr.mxu0 0.0
        %1631 = vmatpush1.msra.mxu0 0.0
        %1632 = vmatprep.subr.mxu0 0.0
        %1633 = vmatpush1.msra.mxu0 0.0
        %1634 = vmatprep.subr.mxu0 0.0
        %1635 = vmatpush1.msra.mxu0 0.0
        %1636 = vmatprep.subr.mxu0 0.0
        %1637 = vmatpush1.msra.mxu0 0.0
        %1638 = vmatprep.subr.mxu0 0.0
        %1639 = vmatpush1.msra.mxu0 0.0
        %1640 = vmatprep.subr.mxu0 0.0
        %1641 = vmatpush1.msra.mxu0 0.0
        %1642 = vmatprep.subr.mxu0 0.0
        %1643 = vmatpush1.msra.mxu0 0.0
        %1644 = vmatprep.subr.mxu0 0.0
        %1645 = vmatpush1.msra.mxu0 0.0
        %1646 = vmatprep.subr.mxu0 0.0
        %1647 = vmatpush1.msra.mxu0 0.0
        %1648 = vmatprep.subr.mxu0 0.0
        %1649 = vmatpush1.msra.mxu0 0.0
        %1650 = vmatprep.subr.mxu0 0.0
        %1651 = vmatpush1.msra.mxu0 0.0
        %1652 = vmatprep.subr.mxu0 0.0
        %1653 = vmatpush1.msra.mxu0 0.0
        %1654 = vmatprep.subr.mxu0 0.0
        %1655 = vmatpush1.msra.mxu0 0.0
        %1656 = vmatprep.subr.mxu0 0.0
        %1657 = vmatpush1.msra.mxu0 0.0
        %1658 = vmatprep.subr.mxu0 0.0
        %1659 = vmatpush1.msra.mxu0 0.0
        %1660 = vmatprep.subr.mxu0 0.0
        %1661 = vmatpush1.msra.mxu0 0.0
        %1662 = vmatprep.subr.mxu0 0.0
        %1663 = vmatpush1.msra.mxu0 0.0
        %1664 = vmatprep.subr.mxu0 0.0
        %1665 = vmatpush1.msra.mxu0 0.0
        %1666 = vmatprep.mubr.f32.mxu0 0.0
        %1667 = vmatmul.mubr.f32.gmra.mrb[0].mxu0 %v1591
        %v1668 = vpop.f32.mrb[0].mxu0
        %v1669 = vadd.f32 %v1573, %v1668
        %v1670 = vpop.f32.mrb[0].mxu0
        %1671 = vmatprep.mubr.f32.mxu0 0.0
        %1672 = vmatmul.mubr.f32.gmra.mrb[0].mxu0 %v1594
        %v1673 = vpop.f32.mrb[0].mxu0
        %v1674 = vadd.f32 %v1578, %v1673
        %v1675 = vpop.f32.mrb[0].mxu0
        %1676 = vmatprep.mubr.f32.mxu0 0.0
        %1677 = vmatmul.mubr.f32.gmra.mrb[0].mxu0 %v1597
        %v1678 = vpop.f32.mrb[0].mxu0
        %v1679 = vadd.f32 %v1583, %v1678
        %v1680 = vpop.f32.mrb[0].mxu0
        %1681 = vmatprep.mubr.f32.mxu0 0.0
        %1682 = vmatmul.mubr.f32.gmra.mrb[0].mxu0 %v1600
        %v1683 = vpop.f32.mrb[0].mxu0
        %v1684 = vadd.f32 %v1588, %v1683
        %v1685 = vpop.f32.mrb[0].mxu0
        %1686 = vdwg.mxu0
        %v1687 = vadd.f32 %v1165, %v1669
        %v1688 = vadd.f32 %v1167, %v1674
        %v1689 = vmul.f32 %v1687, %v1151
        %v1690 = vmul.f32 %v1688, %v1151
        %1691 = vst [vmem:[#allocation2 + $0x8] sm:$0xff] %v1689
        %1692 = vst [vmem:[#allocation2 + $0x20] sm:$0xff] %v1690
        %v1693 = vadd.f32 %v1157, %v1679
        %v1694 = vadd.f32 %v1158, %v1684
        %s1695 = scalar_lea.vmem %s3, 192
        %v1696 = vld [vmem:[%s1695] sm:$0xff]
        %v1697 = vld [vmem:[%s1695 + $0x8] sm:$0xff]
        %v1698 = vld [vmem:[%s1695 + $0x10] sm:$0xff]
        %v1699 = vld [vmem:[%s1695 + $0x18] sm:$0xff]
        %v1700 = vld [vmem:[#allocation2] sm:$0xff]
        %v1701 = vld [vmem:[#allocation2 + $0x8] sm:$0xff]
        %v1702 = vld [vmem:[#allocation2 + $0x18] sm:$0xff]
        %v1703 = vld [vmem:[#allocation2 + $0x20] sm:$0xff]
        %s1704 = scalar_lea.vmem %s3, 224
        %v1705 = vld [vmem:[%s1704] sm:$0xff]
        %v1706 = vld [vmem:[%s1704 + $0x8] sm:$0xff]
        %v1707 = vld [vmem:[%s1704 + $0x10] sm:$0xff]
        %v1708 = vld [vmem:[%s1704 + $0x18] sm:$0xff]
        %v1710 = vsel %vm633, %v1705, 0
        %v1713 = vsel %vm633, %v1706, 0
        %v1716 = vsel %vm633, %v1707, 0
        %v1719 = vsel %vm633, %v1708, 0
        %1721 = vmatprep.subr.mxu0 0.0
        %1722 = vmatpush1.msra.mxu0 %v1701
        %1723 = vmatprep.subr.mxu0 0.0
        %1724 = vmatpush1.msra.mxu0 %v1703
        %1725 = vmatprep.subr.mxu0 0.0
        %1726 = vmatpush1.msra.mxu0 0.0
        %1727 = vmatprep.subr.mxu0 0.0
        %1728 = vmatpush1.msra.mxu0 0.0
        %1729 = vmatprep.subr.mxu0 0.0
        %1730 = vmatpush1.msra.mxu0 0.0
        %1731 = vmatprep.subr.mxu0 0.0
        %1732 = vmatpush1.msra.mxu0 0.0
        %1733 = vmatprep.subr.mxu0 0.0
        %1734 = vmatpush1.msra.mxu0 0.0
        %1735 = vmatprep.subr.mxu0 0.0
        %1736 = vmatpush1.msra.mxu0 0.0
        %1737 = vmatprep.subr.mxu0 0.0
        %1738 = vmatpush1.msra.mxu0 0.0
        %1739 = vmatprep.subr.mxu0 0.0
        %1740 = vmatpush1.msra.mxu0 0.0
        %1741 = vmatprep.subr.mxu0 0.0
        %1742 = vmatpush1.msra.mxu0 0.0
        %1743 = vmatprep.subr.mxu0 0.0
        %1744 = vmatpush1.msra.mxu0 0.0
        %1745 = vmatprep.subr.mxu0 0.0
        %1746 = vmatpush1.msra.mxu0 0.0
        %1747 = vmatprep.subr.mxu0 0.0
        %1748 = vmatpush1.msra.mxu0 0.0
        %1749 = vmatprep.subr.mxu0 0.0
        %1750 = vmatpush1.msra.mxu0 0.0
        %1751 = vmatprep.subr.mxu0 0.0
        %1752 = vmatpush1.msra.mxu0 0.0
        %1753 = vmatprep.subr.mxu0 0.0
        %1754 = vmatpush1.msra.mxu0 0.0
        %1755 = vmatprep.subr.mxu0 0.0
        %1756 = vmatpush1.msra.mxu0 0.0
        %1757 = vmatprep.subr.mxu0 0.0
        %1758 = vmatpush1.msra.mxu0 0.0
        %1759 = vmatprep.subr.mxu0 0.0
        %1760 = vmatpush1.msra.mxu0 0.0
        %1761 = vmatprep.subr.mxu0 0.0
        %1762 = vmatpush1.msra.mxu0 0.0
        %1763 = vmatprep.subr.mxu0 0.0
        %1764 = vmatpush1.msra.mxu0 0.0
        %1765 = vmatprep.subr.mxu0 0.0
        %1766 = vmatpush1.msra.mxu0 0.0
        %1767 = vmatprep.subr.mxu0 0.0
        %1768 = vmatpush1.msra.mxu0 0.0
        %1769 = vmatprep.subr.mxu0 0.0
        %1770 = vmatpush1.msra.mxu0 0.0
        %1771 = vmatprep.subr.mxu0 0.0
        %1772 = vmatpush1.msra.mxu0 0.0
        %1773 = vmatprep.subr.mxu0 0.0
        %1774 = vmatpush1.msra.mxu0 0.0
        %1775 = vmatprep.subr.mxu0 0.0
        %1776 = vmatpush1.msra.mxu0 0.0
        %1777 = vmatprep.subr.mxu0 0.0
        %1778 = vmatpush1.msra.mxu0 0.0
        %1779 = vmatprep.subr.mxu0 0.0
        %1780 = vmatpush1.msra.mxu0 0.0
        %1781 = vmatprep.subr.mxu0 0.0
        %1782 = vmatpush1.msra.mxu0 0.0
        %1783 = vmatprep.subr.mxu0 0.0
        %1784 = vmatpush1.msra.mxu0 0.0
        %1785 = vmatprep.mubr.f32.mxu0 0.0
        %1786 = vmatmul.mubr.f32.gmra.mrb[0].mxu0 %v1710
        %v1787 = vpop.f32.mrb[0].mxu0
        %v1788 = vadd.f32 0.0, %v1787
        %v1789 = vpop.f32.mrb[0].mxu0
        %1790 = vmatprep.mubr.f32.mxu0 0.0
        %1791 = vmatmul.mubr.f32.gmra.mrb[0].mxu0 %v1713
        %v1792 = vpop.f32.mrb[0].mxu0
        %v1793 = vadd.f32 0.0, %v1792
        %v1794 = vpop.f32.mrb[0].mxu0
        %1795 = vmatprep.mubr.f32.mxu0 0.0
        %1796 = vmatmul.mubr.f32.gmra.mrb[0].mxu0 %v1716
        %v1797 = vpop.f32.mrb[0].mxu0
        %v1798 = vadd.f32 0.0, %v1797
        %v1799 = vpop.f32.mrb[0].mxu0
        %1800 = vmatprep.mubr.f32.mxu0 0.0
        %1801 = vmatmul.mubr.f32.gmra.mrb[0].mxu0 %v1719
        %v1802 = vpop.f32.mrb[0].mxu0
        %v1803 = vadd.f32 0.0, %v1802
        %v1804 = vpop.f32.mrb[0].mxu0
        %1805 = vdwg.mxu0
        %1810 = vrot.lane.b32.xlu0 %v1700, 4
        %v1811 = vpop.permute.xlu0 %1810
        %1812 = vrot.lane.b32.xlu0 %v1701, 4
        %v1813 = vpop.permute.xlu0 %1812
        %1814 = vrot.lane.b32.xlu0 %v1702, 4
        %v1815 = vpop.permute.xlu0 %1814
        %1816 = vrot.lane.b32.xlu0 %v1703, 4
        %v1817 = vpop.permute.xlu0 %1816
        %vm1818 = vcmask 31744
        %v1819 = vsel %vm1818, %v1811, %v1813
        %v1820 = vsel %vm1818, %v1815, %v1817
        %v1824 = vsel %vm633, %v1696, 0
        %v1827 = vsel %vm633, %v1697, 0
        %v1830 = vsel %vm633, %v1698, 0
        %v1833 = vsel %vm633, %v1699, 0
        %1835 = vmatprep.subr.mxu0 0.0
        %1836 = vmatpush1.msra.mxu0 %v1819
        %1837 = vmatprep.subr.mxu0 0.0
        %1838 = vmatpush1.msra.mxu0 %v1820
        %1839 = vmatprep.subr.mxu0 0.0
        %1840 = vmatpush1.msra.mxu0 0.0
        %1841 = vmatprep.subr.mxu0 0.0
        %1842 = vmatpush1.msra.mxu0 0.0
        %1843 = vmatprep.subr.mxu0 0.0
        %1844 = vmatpush1.msra.mxu0 0.0
        %1845 = vmatprep.subr.mxu0 0.0
        %1846 = vmatpush1.msra.mxu0 0.0
        %1847 = vmatprep.subr.mxu0 0.0
        %1848 = vmatpush1.msra.mxu0 0.0
        %1849 = vmatprep.subr.mxu0 0.0
        %1850 = vmatpush1.msra.mxu0 0.0
        %1851 = vmatprep.subr.mxu0 0.0
        %1852 = vmatpush1.msra.mxu0 0.0
        %1853 = vmatprep.subr.mxu0 0.0
        %1854 = vmatpush1.msra.mxu0 0.0
        %1855 = vmatprep.subr.mxu0 0.0
        %1856 = vmatpush1.msra.mxu0 0.0
        %1857 = vmatprep.subr.mxu0 0.0
        %1858 = vmatpush1.msra.mxu0 0.0
        %1859 = vmatprep.subr.mxu0 0.0
        %1860 = vmatpush1.msra.mxu0 0.0
        %1861 = vmatprep.subr.mxu0 0.0
        %1862 = vmatpush1.msra.mxu0 0.0
        %1863 = vmatprep.subr.mxu0 0.0
        %1864 = vmatpush1.msra.mxu0 0.0
        %1865 = vmatprep.subr.mxu0 0.0
        %1866 = vmatpush1.msra.mxu0 0.0
        %1867 = vmatprep.subr.mxu0 0.0
        %1868 = vmatpush1.msra.mxu0 0.0
        %1869 = vmatprep.subr.mxu0 0.0
        %1870 = vmatpush1.msra.mxu0 0.0
        %1871 = vmatprep.subr.mxu0 0.0
        %1872 = vmatpush1.msra.mxu0 0.0
        %1873 = vmatprep.subr.mxu0 0.0
        %1874 = vmatpush1.msra.mxu0 0.0
        %1875 = vmatprep.subr.mxu0 0.0
        %1876 = vmatpush1.msra.mxu0 0.0
        %1877 = vmatprep.subr.mxu0 0.0
        %1878 = vmatpush1.msra.mxu0 0.0
        %1879 = vmatprep.subr.mxu0 0.0
        %1880 = vmatpush1.msra.mxu0 0.0
        %1881 = vmatprep.subr.mxu0 0.0
        %1882 = vmatpush1.msra.mxu0 0.0
        %1883 = vmatprep.subr.mxu0 0.0
        %1884 = vmatpush1.msra.mxu0 0.0
        %1885 = vmatprep.subr.mxu0 0.0
        %1886 = vmatpush1.msra.mxu0 0.0
        %1887 = vmatprep.subr.mxu0 0.0
        %1888 = vmatpush1.msra.mxu0 0.0
        %1889 = vmatprep.subr.mxu0 0.0
        %1890 = vmatpush1.msra.mxu0 0.0
        %1891 = vmatprep.subr.mxu0 0.0
        %1892 = vmatpush1.msra.mxu0 0.0
        %1893 = vmatprep.subr.mxu0 0.0
        %1894 = vmatpush1.msra.mxu0 0.0
        %1895 = vmatprep.subr.mxu0 0.0
        %1896 = vmatpush1.msra.mxu0 0.0
        %1897 = vmatprep.subr.mxu0 0.0
        %1898 = vmatpush1.msra.mxu0 0.0
        %1899 = vmatprep.mubr.f32.mxu0 0.0
        %1900 = vmatmul.mubr.f32.gmra.mrb[0].mxu0 %v1824
        %v1901 = vpop.f32.mrb[0].mxu0
        %v1902 = vadd.f32 %v1788, %v1901
        %v1903 = vpop.f32.mrb[0].mxu0
        %1904 = vmatprep.mubr.f32.mxu0 0.0
        %1905 = vmatmul.mubr.f32.gmra.mrb[0].mxu0 %v1827
        %v1906 = vpop.f32.mrb[0].mxu0
        %v1907 = vadd.f32 %v1793, %v1906
        %v1908 = vpop.f32.mrb[0].mxu0
        %1909 = vmatprep.mubr.f32.mxu0 0.0
        %1910 = vmatmul.mubr.f32.gmra.mrb[0].mxu0 %v1830
        %v1911 = vpop.f32.mrb[0].mxu0
        %v1912 = vadd.f32 %v1798, %v1911
        %v1913 = vpop.f32.mrb[0].mxu0
        %1914 = vmatprep.mubr.f32.mxu0 0.0
        %1915 = vmatmul.mubr.f32.gmra.mrb[0].mxu0 %v1833
        %v1916 = vpop.f32.mrb[0].mxu0
        %v1917 = vadd.f32 %v1803, %v1916
        %v1918 = vpop.f32.mrb[0].mxu0
        %1919 = vdwg.mxu0
        %s1920 = scalar_lea.vmem %s3, 256
        %v1921 = vld [vmem:[%s1920] sm:$0xff]
        %v1922 = vld [vmem:[%s1920 + $0x8] sm:$0xff]
        %v1923 = vld [vmem:[%s1920 + $0x10] sm:$0xff]
        %v1924 = vld [vmem:[%s1920 + $0x18] sm:$0xff]
        %v1925 = vld [vmem:[#allocation2 + $0x8] sm:$0xff]
        %v1926 = vld [vmem:[#allocation2 + $0x10] sm:$0xff]
        %v1927 = vld [vmem:[#allocation2 + $0x20] sm:$0xff]
        %v1928 = vld [vmem:[#allocation2 + $0x28] sm:$0xff]
        %1933 = vrot.lane.b32.xlu0 %v1925, 124
        %v1934 = vpop.permute.xlu0 %1933
        %1935 = vrot.lane.b32.xlu0 %v1926, 124
        %v1936 = vpop.permute.xlu0 %1935
        %1937 = vrot.lane.b32.xlu0 %v1927, 124
        %v1938 = vpop.permute.xlu0 %1937
        %1939 = vrot.lane.b32.xlu0 %v1928, 124
        %v1940 = vpop.permute.xlu0 %1939
        %vm1941 = vcmask 1014784
        %v1942 = vsel %vm1941, %v1934, %v1936
        %v1943 = vsel %vm1941, %v1938, %v1940
        %v1947 = vsel %vm633, %v1921, 0
        %v1950 = vsel %vm633, %v1922, 0
        %v1953 = vsel %vm633, %v1923, 0
        %v1956 = vsel %vm633, %v1924, 0
        %1958 = vmatprep.subr.mxu0 0.0
        %1959 = vmatpush1.msra.mxu0 %v1942
        %1960 = vmatprep.subr.mxu0 0.0
        %1961 = vmatpush1.msra.mxu0 %v1943
        %1962 = vmatprep.subr.mxu0 0.0
        %1963 = vmatpush1.msra.mxu0 0.0
        %1964 = vmatprep.subr.mxu0 0.0
        %1965 = vmatpush1.msra.mxu0 0.0
        %1966 = vmatprep.subr.mxu0 0.0
        %1967 = vmatpush1.msra.mxu0 0.0
        %1968 = vmatprep.subr.mxu0 0.0
        %1969 = vmatpush1.msra.mxu0 0.0
        %1970 = vmatprep.subr.mxu0 0.0
        %1971 = vmatpush1.msra.mxu0 0.0
        %1972 = vmatprep.subr.mxu0 0.0
        %1973 = vmatpush1.msra.mxu0 0.0
        %1974 = vmatprep.subr.mxu0 0.0
        %1975 = vmatpush1.msra.mxu0 0.0
        %1976 = vmatprep.subr.mxu0 0.0
        %1977 = vmatpush1.msra.mxu0 0.0
        %1978 = vmatprep.subr.mxu0 0.0
        %1979 = vmatpush1.msra.mxu0 0.0
        %1980 = vmatprep.subr.mxu0 0.0
        %1981 = vmatpush1.msra.mxu0 0.0
        %1982 = vmatprep.subr.mxu0 0.0
        %1983 = vmatpush1.msra.mxu0 0.0
        %1984 = vmatprep.subr.mxu0 0.0
        %1985 = vmatpush1.msra.mxu0 0.0
        %1986 = vmatprep.subr.mxu0 0.0
        %1987 = vmatpush1.msra.mxu0 0.0
        %1988 = vmatprep.subr.mxu0 0.0
        %1989 = vmatpush1.msra.mxu0 0.0
        %1990 = vmatprep.subr.mxu0 0.0
        %1991 = vmatpush1.msra.mxu0 0.0
        %1992 = vmatprep.subr.mxu0 0.0
        %1993 = vmatpush1.msra.mxu0 0.0
        %1994 = vmatprep.subr.mxu0 0.0
        %1995 = vmatpush1.msra.mxu0 0.0
        %1996 = vmatprep.subr.mxu0 0.0
        %1997 = vmatpush1.msra.mxu0 0.0
        %1998 = vmatprep.subr.mxu0 0.0
        %1999 = vmatpush1.msra.mxu0 0.0
        %2000 = vmatprep.subr.mxu0 0.0
        %2001 = vmatpush1.msra.mxu0 0.0
        %2002 = vmatprep.subr.mxu0 0.0
        %2003 = vmatpush1.msra.mxu0 0.0
        %2004 = vmatprep.subr.mxu0 0.0
        %2005 = vmatpush1.msra.mxu0 0.0
        %2006 = vmatprep.subr.mxu0 0.0
        %2007 = vmatpush1.msra.mxu0 0.0
        %2008 = vmatprep.subr.mxu0 0.0
        %2009 = vmatpush1.msra.mxu0 0.0
        %2010 = vmatprep.subr.mxu0 0.0
        %2011 = vmatpush1.msra.mxu0 0.0
        %2012 = vmatprep.subr.mxu0 0.0
        %2013 = vmatpush1.msra.mxu0 0.0
        %2014 = vmatprep.subr.mxu0 0.0
        %2015 = vmatpush1.msra.mxu0 0.0
        %2016 = vmatprep.subr.mxu0 0.0
        %2017 = vmatpush1.msra.mxu0 0.0
        %2018 = vmatprep.subr.mxu0 0.0
        %2019 = vmatpush1.msra.mxu0 0.0
        %2020 = vmatprep.subr.mxu0 0.0
        %2021 = vmatpush1.msra.mxu0 0.0
        %2022 = vmatprep.mubr.f32.mxu0 0.0
        %2023 = vmatmul.mubr.f32.gmra.mrb[0].mxu0 %v1947
        %v2024 = vpop.f32.mrb[0].mxu0
        %v2025 = vadd.f32 0.0, %v2024
        %v2026 = vpop.f32.mrb[0].mxu0
        %2027 = vmatprep.mubr.f32.mxu0 0.0
        %2028 = vmatmul.mubr.f32.gmra.mrb[0].mxu0 %v1950
        %v2029 = vpop.f32.mrb[0].mxu0
        %v2030 = vadd.f32 0.0, %v2029
        %v2031 = vpop.f32.mrb[0].mxu0
        %2032 = vmatprep.mubr.f32.mxu0 0.0
        %2033 = vmatmul.mubr.f32.gmra.mrb[0].mxu0 %v1953
        %v2034 = vpop.f32.mrb[0].mxu0
        %v2035 = vadd.f32 0.0, %v2034
        %v2036 = vpop.f32.mrb[0].mxu0
        %2037 = vmatprep.mubr.f32.mxu0 0.0
        %2038 = vmatmul.mubr.f32.gmra.mrb[0].mxu0 %v1956
        %v2039 = vpop.f32.mrb[0].mxu0
        %v2040 = vadd.f32 0.0, %v2039
        %v2041 = vpop.f32.mrb[0].mxu0
        %2042 = vdwg.mxu0
        %v2043 = vadd.f32 %v1902, %v2025
        %v2044 = vadd.f32 %v1907, %v2030
        %v2045 = vadd.f32 %v1912, %v2035
        %v2046 = vadd.f32 %v1917, %v2040
        %s2047 = scalar_lea.vmem %s4, 64
        %v2048 = vld [vmem:[%s2047] sm:$0xff]
        %v2049 = vld [vmem:[%s2047 + $0x8] sm:$0xff]
        %v2050 = vld [vmem:[%s2047 + $0x10] sm:$0xff]
        %v2051 = vld [vmem:[%s2047 + $0x18] sm:$0xff]
        %2053 = vset.pattern.permute.xlu0 0
        %2054 = vperm.xlu0 %2053, %v2048
        %v2055 = vpop.permute.xlu0 %2054
        %2058 = vset.pattern.permute.xlu0 0
        %2059 = vperm.xlu0 %2058, %v2049
        %v2060 = vpop.permute.xlu0 %2059
        %2063 = vset.pattern.permute.xlu0 0
        %2064 = vperm.xlu0 %2063, %v2050
        %v2065 = vpop.permute.xlu0 %2064
        %2068 = vset.pattern.permute.xlu0 0
        %2069 = vperm.xlu0 %2068, %v2051
        %v2070 = vpop.permute.xlu0 %2069
        %v2072 = vadd.f32 %v2043, %v2055
        %v2073 = vadd.f32 %v2044, %v2060
        %v2074 = vadd.f32 %v2045, %v2065
        %v2075 = vadd.f32 %v2046, %v2070
        %v2076 = vadd.f32 %v2072, %v602
        %v2077 = vadd.f32 %v2073, %v607
        %v2078 = vadd.f32 %v2074, %v612
        %v2079 = vadd.f32 %v2075, %v617
        %v2080 = vtanh.pop %v2076
        %v2081 = vtanh.pop %v2077
        %v2082 = vxor.u32 %v2078, 2147483648
        %v2083 = vxor.u32 %v2079, 2147483648
        %v2084 = vmul.f32 %v2082, 1.442695
        %v2085 = vpow.pop %v2084
        %v2086 = vmul.f32 %v2083, 1.442695
        %v2087 = vpow.pop %v2086
        %v2088 = vadd.f32 %v2085, 1.0
        %v2089 = vadd.f32 %v2087, 1.0
        %v2090 = vrcp.pop %v2088
        %v2091 = vmul.f32 1.0, %v2090
        %v2092 = vrcp.pop %v2089
        %v2093 = vmul.f32 1.0, %v2092
        %v2094 = vmul.f32 %v2080, %v2091
        %v2095 = vmul.f32 %v2081, %v2093
        %s2096 = scalar_lea.vmem %s5, 64
        %v2097 = vld [vmem:[%s2096] sm:$0xff]
        %v2098 = vld [vmem:[%s2096 + $0x8] sm:$0xff]
        %v2099 = vld [vmem:[%s2096 + $0x10] sm:$0xff]
        %v2100 = vld [vmem:[%s2096 + $0x18] sm:$0xff]
        %s2101 = scalar_lea.vmem %s6, 64
        %v2102 = vld [vmem:[%s2101] sm:$0xff]
        %v2103 = vld [vmem:[%s2101 + $0x8] sm:$0xff]
        %v2104 = vld [vmem:[%s2101 + $0x10] sm:$0xff]
        %v2105 = vld [vmem:[%s2101 + $0x18] sm:$0xff]
        %2107 = vset.pattern.permute.xlu0 0
        %2108 = vperm.xlu0 %2107, %v2102
        %v2109 = vpop.permute.xlu0 %2108
        %2112 = vset.pattern.permute.xlu0 0
        %2113 = vperm.xlu0 %2112, %v2103
        %v2114 = vpop.permute.xlu0 %2113
        %2117 = vset.pattern.permute.xlu0 0
        %2118 = vperm.xlu0 %2117, %v2104
        %v2119 = vpop.permute.xlu0 %2118
        %2121 = vset.pattern.permute.xlu0 0
        %2122 = vperm.xlu0 %2121, %v2105
        %v2123 = vpop.permute.xlu0 %2122
        %v2125 = vsel %vm633, %v2097, 0
        %v2128 = vsel %vm633, %v2098, 0
        %v2131 = vsel %vm633, %v2099, 0
        %v2134 = vsel %vm633, %v2100, 0
        %2136 = vmatprep.subr.mxu0 0.0
        %2137 = vmatpush1.msra.mxu0 %v2094
        %2138 = vmatprep.subr.mxu0 0.0
        %2139 = vmatpush1.msra.mxu0 %v2095
        %2140 = vmatprep.subr.mxu0 0.0
        %2141 = vmatpush1.msra.mxu0 0.0
        %2142 = vmatprep.subr.mxu0 0.0
        %2143 = vmatpush1.msra.mxu0 0.0
        %2144 = vmatprep.subr.mxu0 0.0
        %2145 = vmatpush1.msra.mxu0 0.0
        %2146 = vmatprep.subr.mxu0 0.0
        %2147 = vmatpush1.msra.mxu0 0.0
        %2148 = vmatprep.subr.mxu0 0.0
        %2149 = vmatpush1.msra.mxu0 0.0
        %2150 = vmatprep.subr.mxu0 0.0
        %2151 = vmatpush1.msra.mxu0 0.0
        %2152 = vmatprep.subr.mxu0 0.0
        %2153 = vmatpush1.msra.mxu0 0.0
        %2154 = vmatprep.subr.mxu0 0.0
        %2155 = vmatpush1.msra.mxu0 0.0
        %2156 = vmatprep.subr.mxu0 0.0
        %2157 = vmatpush1.msra.mxu0 0.0
        %2158 = vmatprep.subr.mxu0 0.0
        %2159 = vmatpush1.msra.mxu0 0.0
        %2160 = vmatprep.subr.mxu0 0.0
        %2161 = vmatpush1.msra.mxu0 0.0
        %2162 = vmatprep.subr.mxu0 0.0
        %2163 = vmatpush1.msra.mxu0 0.0
        %2164 = vmatprep.subr.mxu0 0.0
        %2165 = vmatpush1.msra.mxu0 0.0
        %2166 = vmatprep.subr.mxu0 0.0
        %2167 = vmatpush1.msra.mxu0 0.0
        %2168 = vmatprep.subr.mxu0 0.0
        %2169 = vmatpush1.msra.mxu0 0.0
        %2170 = vmatprep.subr.mxu0 0.0
        %2171 = vmatpush1.msra.mxu0 0.0
        %2172 = vmatprep.subr.mxu0 0.0
        %2173 = vmatpush1.msra.mxu0 0.0
        %2174 = vmatprep.subr.mxu0 0.0
        %2175 = vmatpush1.msra.mxu0 0.0
        %2176 = vmatprep.subr.mxu0 0.0
        %2177 = vmatpush1.msra.mxu0 0.0
        %2178 = vmatprep.subr.mxu0 0.0
        %2179 = vmatpush1.msra.mxu0 0.0
        %2180 = vmatprep.subr.mxu0 0.0
        %2181 = vmatpush1.msra.mxu0 0.0
        %2182 = vmatprep.subr.mxu0 0.0
        %2183 = vmatpush1.msra.mxu0 0.0
        %2184 = vmatprep.subr.mxu0 0.0
        %2185 = vmatpush1.msra.mxu0 0.0
        %2186 = vmatprep.subr.mxu0 0.0
        %2187 = vmatpush1.msra.mxu0 0.0
        %2188 = vmatprep.subr.mxu0 0.0
        %2189 = vmatpush1.msra.mxu0 0.0
        %2190 = vmatprep.subr.mxu0 0.0
        %2191 = vmatpush1.msra.mxu0 0.0
        %2192 = vmatprep.subr.mxu0 0.0
        %2193 = vmatpush1.msra.mxu0 0.0
        %2194 = vmatprep.subr.mxu0 0.0
        %2195 = vmatpush1.msra.mxu0 0.0
        %2196 = vmatprep.subr.mxu0 0.0
        %2197 = vmatpush1.msra.mxu0 0.0
        %2198 = vmatprep.subr.mxu0 0.0
        %2199 = vmatpush1.msra.mxu0 0.0
        %2200 = vmatprep.mubr.f32.mxu0 0.0
        %2201 = vmatmul.mubr.f32.gmra.mrb[0].mxu0 %v2125
        %v2202 = vpop.f32.mrb[0].mxu0
        %v2203 = vadd.f32 %v2109, %v2202
        %v2204 = vpop.f32.mrb[0].mxu0
        %2205 = vmatprep.mubr.f32.mxu0 0.0
        %2206 = vmatmul.mubr.f32.gmra.mrb[0].mxu0 %v2128
        %v2207 = vpop.f32.mrb[0].mxu0
        %v2208 = vadd.f32 %v2114, %v2207
        %v2209 = vpop.f32.mrb[0].mxu0
        %2210 = vmatprep.mubr.f32.mxu0 0.0
        %2211 = vmatmul.mubr.f32.gmra.mrb[0].mxu0 %v2131
        %v2212 = vpop.f32.mrb[0].mxu0
        %v2213 = vpop.f32.mrb[0].mxu0
        %2214 = vmatprep.mubr.f32.mxu0 0.0
        %2215 = vmatmul.mubr.f32.gmra.mrb[0].mxu0 %v2134
        %v2216 = vpop.f32.mrb[0].mxu0
        %v2217 = vpop.f32.mrb[0].mxu0
        %2218 = vdwg.mxu0
        %v2219 = vadd.f32 %v1693, %v2203
        %v2220 = vadd.f32 %v1694, %v2208
        %v2221 = vmul.f32 %v2219, %v1151
        %v2222 = vmul.f32 %v2220, %v1151
        %2223 = vst [vmem:[%s349] sm:$0xff] %v2221
        %2224 = vst [vmem:[%s349 + $0x8] sm:$0xff] %v2222
        %s2225 = sand.u32 %s235, 1
        %s2226 = scalar_lea.sflag [#allocation4], %s2225
        %s2227 = sand.u32 %s235, 1
        %s2228 = smul.addr %s2227, 16
        %s2229 = scalar_lea.vmem [#allocation3], %s2228
        // Predicated region
        $region57: #{tpu_custom_call.1} parent=55 // pred_check
          %p2230 = pneg %p245
        $region58: #{tpu_custom_call.1} parent=55 // pred_check_branch
          %2232 = sbr.rel (%p2230) target = $region60
        $region59: #{tpu_custom_call.1} parent=55 // pred_region
          %s2234 = ssub.s32 256, 256
          %2235 = vsyncadd %s2226, %s2234
          %s2236 = smul.addr %s23, 2
          %s2237 = smul.addr %s2236, 128
          %s2238 = scalar_lea.hbm %s9, %s2237
          %s2239 = sshll.u32 %s2229, 4
          %s2240 = int_to_ptr.vmem [resolvable:$true] %s2239
          %2245 = dma.vmem_to_hbm [thread:$0]  %s2240, 256, %s2238, %s2226, 128, 128, 8
        $region60: #{tpu_custom_call.1} parent=55 // pred_fallthru
          _
      $region56: #{tpu_custom_call.1} parent=5 // pred_fallthru
        _
      %p2246 = scmp.le.s32.totalorder 2, %s18
      // Predicated region
      $region61: #{tpu_custom_call.1} parent=5 // pred_check
        %p2247 = pneg %p2246
      $region62: #{tpu_custom_call.1} parent=5 // pred_check_branch
        %2249 = sbr.rel (%p2247) target = $region64
      $region63: #{tpu_custom_call.1} parent=5 // pred_region
        %s2250 = ssub.s32 %s18, 2
        // Predicated region
        $region65: #{tpu_custom_call.1} parent=63 // pred_check
          %p2251 = pneg %p251
        $region66: #{tpu_custom_call.1} parent=63 // pred_check_branch
          %2253 = sbr.rel (%p2251) target = $region68
        $region67: #{tpu_custom_call.1} parent=63 // pred_region
          %s2254 = sand.u32 %s236, 1
          %s2255 = scalar_lea.sflag [#allocation4], %s2254
          %s2256 = sand.u32 %s236, 1
          %s2257 = smul.addr %s2256, 16
          %s2258 = scalar_lea.vmem [#allocation3], %s2257
          %2259 = dma.done %s2255, 256
        $region68: #{tpu_custom_call.1} parent=63 // pred_fallthru
          _
      $region64: #{tpu_custom_call.1} parent=5 // pred_fallthru
        _
    $region6: #{tpu_custom_call.1} parent=1 // loop_footer
      %s22 = sadd.s32 1, %s18
    $region7: #{tpu_custom_call.1} parent=1 // loop_footer_branch
      %17 = sbr.rel target = $region3
    $region8: #{tpu_custom_call.1} parent=1 // loop_exit
      _
    %2260 = vsyncpa [#allocation4], 1
    %s2261 = scalar_lea.sflag [#allocation4], 1
    %2262 = vsyncpa %s2261, 1

</llo_original>
